<compile_context>
chip_gen: v6e
topology: v6e:2x2x1
jax: 0.10.0
libtpu: 0.0.40
codegen_flags: <defaults>
</compile_context>

<pallas_src>
import math
import functools

import jax
import jax.numpy as jnp
import numpy as np
from jax import lax
from jax.experimental import pallas as pl
from jax.experimental.pallas import tpu as pltpu


def _encoder_block_kernel(ln_ref, x_ref, w_ref, out_ref, ctx_ref,
                          *, B, S, D, H, d_ff, eps):
    dk = D // H
    N = B * S
    x = x_ref[...].astype(jnp.float32).reshape(N, D)          # (B*S, D)

    def layer_norm(v, alpha, bias):
        mean = jnp.mean(v, axis=-1, keepdims=True)
        diff = v - mean
        # torch.Tensor.std defaults to the UNBIASED estimator (divide by D-1).
        var = jnp.sum(diff * diff, axis=-1, keepdims=True) * (1.0 / (D - 1))
        return alpha * diff / (jnp.sqrt(var) + eps) + bias

    # ---- carve the packed weight slab (static, lane-offset-0 slices; one DMA upstream) ----
    wqkvT = w_ref[0:D, 0:3 * D]            # (D, 3D)   x @ wqkvT = [q*scale | k | v]
    woT   = w_ref[D:2 * D, 0:D]            # (D, D)
    w1T   = w_ref[2 * D:3 * D, 0:d_ff]     # (D, d_ff)
    w2    = w_ref[3 * D:4 * D, 0:d_ff]     # (D, d_ff) native nn.Linear layout (contract last dim)
    bias  = w_ref[4 * D:4 * D + 8, :]      # (8, LANES) bias rows
    bqkv  = bias[0:1, 0:3 * D]
    bo    = bias[1:2, 0:D]
    b1    = bias[2:3, 0:d_ff]
    b2    = bias[3:4, 0:D]

    # ---- sub-layer 1: pre-norm multi-head self-attention + residual ----
    xn = layer_norm(x, ln_ref[0], ln_ref[1])
    # Fused Q/K/V projection: one 3D-lane-wide matmul (Q columns/bias pre-scaled by 1/sqrt(dk)).
    qkv = jnp.dot(xn, wqkvT, preferred_element_type=jnp.float32) + bqkv   # (N, 3D)

    # Per-(batch, head) attention on static slices; each head's context lands in its lane slot
    # of the concatenated-head scratch so the output projection is a single full-width matmul.
    # NOTE: src_mask intentionally not applied (reference discards the masked_fill result).
    # TODO(synk): attention-prob dropout omitted (identity at inference).
    for b in range(B):
        rows = slice(b * S, (b + 1) * S)
        for h in range(H):
            c = h * dk
            qh = qkv[rows, c:c + dk]                        # (S, dk), already scaled
            kh = qkv[rows, D + c:D + c + dk]                # (S, dk)
            vh = qkv[rows, 2 * D + c:2 * D + c + dk]        # (S, dk)
            # q @ k^T without materializing a transpose: contract the last dims on the MXU.
            scores = lax.dot_general(qh, kh, (((1,), (1,)), ((), ())),
                                     preferred_element_type=jnp.float32)  # (S, S)
            scores = scores - jnp.max(scores, axis=-1, keepdims=True)
            e = jnp.exp(scores)
            attn = e / jnp.sum(e, axis=-1, keepdims=True)   # exact divide (per review)
            ctx_ref[rows, c:c + dk] = jnp.dot(attn, vh,
                                              preferred_element_type=jnp.float32)

    attn_out = jnp.dot(ctx_ref[...], woT, preferred_element_type=jnp.float32) + bo
    x1 = x + attn_out

    # ---- sub-layer 2: pre-norm feed-forward + residual ----
    xn2 = layer_norm(x1, ln_ref[2], ln_ref[3])
    hdd = jnp.maximum(
        jnp.dot(xn2, w1T, preferred_element_type=jnp.float32) + b1, 0.0)
    # TODO(synk): FFN hidden dropout omitted (identity at inference).
    ffn = lax.dot_general(hdd, w2, (((1,), (1,)), ((), ())),
                          preferred_element_type=jnp.float32) + b2

    out_ref[...] = (x1 + ffn).reshape(B, S, D).astype(out_ref.dtype)


def encoder_block_forward(x, params, *, n_heads, eps=1e-6):
    B, S, D = x.shape
    d_k = D // n_heads
    d_ff = params["w1"].shape[0]
    scale = 1.0 / math.sqrt(d_k)
    f32 = jnp.float32

    # Lane width of the packed slab: wide enough for the widest block, multiple of 128.
    lanes = max(128, d_ff, 3 * D)
    lanes = ((lanes + 127) // 128) * 128

    def blk(m):
        m = jnp.asarray(m, f32)
        return jnp.pad(m, ((0, 0), (0, lanes - m.shape[-1])))

    # One-time weight layout prep (wrapper side): nn.Linear (out,in) -> (in,out) so the kernel
    # multiplies from the right; Q weight/bias pre-scaled; everything packed into a single
    # lane-dense slab so the kernel pays ONE weight DMA instead of 14.
    wqkvT = jnp.concatenate([jnp.asarray(params["wq"], f32).T * scale,
                             jnp.asarray(params["wk"], f32).T,
                             jnp.asarray(params["wv"], f32).T], axis=1)    # (D, 3D)
    slab = jnp.concatenate([
        blk(wqkvT),                                                         # rows [0,   D)
        blk(jnp.asarray(params["wo"], f32).T),                              # rows [D,  2D)
        blk(jnp.asarray(params["w1"], f32).T),                              # rows [2D, 3D)
        blk(jnp.asarray(params["w2"], f32)),                                # rows [3D, 4D)
        blk(jnp.concatenate([jnp.asarray(params["bq"], f32) * scale,
                             jnp.asarray(params["bk"], f32),
                             jnp.asarray(params["bv"], f32)]).reshape(1, 3 * D)),
        blk(jnp.asarray(params["bo"], f32).reshape(1, D)),
        blk(jnp.asarray(params["b1"], f32).reshape(1, d_ff)),
        blk(jnp.asarray(params["b2"], f32).reshape(1, D)),
    ], axis=0)                                                              # (4D+4, lanes)
    slab = jnp.pad(slab, ((0, 4 * D + 8 - slab.shape[0]), (0, 0)))          # (4D+8, lanes)

    # Scalar LayerNorm parameters live in SMEM: [alpha1, bias1, alpha2, bias2].
    ln = jnp.array([params["ln1_alpha"], params["ln1_bias"],
                    params["ln2_alpha"], params["ln2_bias"]], dtype=f32)

    kernel = functools.partial(_encoder_block_kernel,
                               B=B, S=S, D=D, H=n_heads, d_ff=d_ff, eps=eps)

    # Single fused invocation (no grid): all B*S token rows, the weight slab and the context
    # scratch total ~75 KiB of VMEM, so the whole block runs in one pipeline step.
    return pl.pallas_call(
        kernel,
        out_shape=jax.ShapeDtypeStruct((B, S, D), x.dtype),
        in_specs=[pl.BlockSpec(memory_space=pltpu.MemorySpace.SMEM),   # LN scalars
                  pl.BlockSpec(memory_space=pltpu.MemorySpace.VMEM),   # x
                  pl.BlockSpec(memory_space=pltpu.MemorySpace.VMEM)],  # packed weight slab
        out_specs=pl.BlockSpec(memory_space=pltpu.MemorySpace.VMEM),
        scratch_shapes=[pltpu.VMEM((B * S, D), jnp.float32)],          # concatenated-head ctx
    )(ln, x, slab)


def ref_forward(x, params, *, n_heads, eps=1e-6):
    """Pure-NumPy float64 reference mirroring the PyTorch EncoderBlock (mask no-op, no dropout)."""
    x = np.asarray(x, np.float64)
    g = lambda k: np.asarray(params[k], np.float64)
    B, S, D = x.shape
    d_k = D // n_heads

    def layer_norm(v, alpha, bias):
        mean = v.mean(axis=-1, keepdims=True)
        std = np.sqrt(((v - mean) ** 2).sum(axis=-1, keepdims=True) / (D - 1))
        return alpha * (v - mean) / (std + eps) + bias

    # sub-layer 1: self-attention with pre-norm residual
    xn = layer_norm(x, params["ln1_alpha"], params["ln1_bias"])
    qp = xn @ g("wq").T + g("bq")
    kp = xn @ g("wk").T + g("bk")
    vp = xn @ g("wv").T + g("bv")

    def split(t):
        return t.reshape(B, S, n_heads, d_k).transpose(0, 2, 1, 3)

    Q, K, V = split(qp), split(kp), split(vp)
    scores = Q @ K.transpose(0, 1, 3, 2) / math.sqrt(d_k)
    scores = scores - scores.max(axis=-1, keepdims=True)
    e = np.exp(scores)
    attn = e / e.sum(axis=-1, keepdims=True)
    ctx = (attn @ V).transpose(0, 2, 1, 3).reshape(B, S, D)
    x = x + (ctx @ g("wo").T + g("bo"))

    # sub-layer 2: feed-forward with pre-norm residual
    xn2 = layer_norm(x, params["ln2_alpha"], params["ln2_bias"])
    hdd = np.maximum(xn2 @ g("w1").T + g("b1"), 0.0)
    return x + (hdd @ g("w2").T + g("b2"))


if __name__ == "__main__":
    B, S, D, H, DFF = 2, 8, 32, 4, 128   # batch, seq, d_model, heads, d_ff

    key = jax.random.PRNGKey(0)
    keys = jax.random.split(key, 13)

    sa = 1.0 / math.sqrt(D)
    s2 = 1.0 / math.sqrt(DFF)
    u = lambda k, shape, s: jax.random.uniform(k, shape, jnp.float32, -s, s)
    params = {
        "wq": u(keys[0], (D, D), sa),    "bq": u(keys[1], (D,), sa),
        "wk": u(keys[2], (D, D), sa),    "bk": u(keys[3], (D,), sa),
        "wv": u(keys[4], (D, D), sa),    "bv": u(keys[5], (D,), sa),
        "wo": u(keys[6], (D, D), sa),    "bo": u(keys[7], (D,), sa),
        "w1": u(keys[8], (DFF, D), sa),  "b1": u(keys[9], (DFF,), sa),
        "w2": u(keys[10], (D, DFF), s2), "b2": u(keys[11], (D,), s2),
        "ln1_alpha": 1.07, "ln1_bias": -0.04,
        "ln2_alpha": 0.93, "ln2_bias": 0.06,
    }

    x = jax.random.normal(keys[12], (B, S, D), jnp.float32)
    # src_mask is a functional no-op in the reference (masked_fill result discarded),
    # so it is not an input to the kernel.

    out = encoder_block_forward(x, params, n_heads=H)
    out = jax.block_until_ready(out)

    ref = ref_forward(x, params, n_heads=H)
    # Exact softmax reciprocal (review fix) -> tolerance now only covers MXU f32 pass rounding.
    np.testing.assert_allclose(np.asarray(out, np.float64), ref, rtol=5e-3, atol=5e-3)
    print("KERNEL_OK")
</pallas_src>

<mosaic_0001>
module attributes {stable_mosaic.version = 11 : i64} {
  func.func @_encoder_block_kernel(%arg0: memref<4xf32, #tpu.memory_space<smem>>, %arg1: memref<2x8x32xf32, #tpu.memory_space<vmem>>, %arg2: memref<136x128xf32, #tpu.memory_space<vmem>>, %arg3: memref<2x8x32xf32, #tpu.memory_space<vmem>>, %arg4: memref<16x32xf32, #tpu.memory_space<vmem>>) attributes {dimension_semantics = [], scalar_prefetch = 0 : i64, scratch_operands = 1 : i64, tpu.core_type = #tpu.core_type<tc>} {
    %c0 = arith.constant 0 : index
    %c0_0 = arith.constant 0 : index
    %c0_1 = arith.constant 0 : index
    %0 = vector.load %arg1[%c0, %c0_0, %c0_1] : memref<2x8x32xf32, #tpu.memory_space<vmem>>, vector<2x8x32xf32>
    %1 = vector.shape_cast %0 : vector<2x8x32xf32> to vector<16x32xf32>
    %c0_2 = arith.constant 0 : index
    %c0_3 = arith.constant 0 : index
    %2 = vector.load %arg2[%c0_2, %c0_3] : memref<136x128xf32, #tpu.memory_space<vmem>>, vector<32x96xf32>
    %c32 = arith.constant 32 : index
    %c0_4 = arith.constant 0 : index
    %3 = vector.load %arg2[%c32, %c0_4] : memref<136x128xf32, #tpu.memory_space<vmem>>, vector<32x32xf32>
    %c64 = arith.constant 64 : index
    %c0_5 = arith.constant 0 : index
    %4 = vector.load %arg2[%c64, %c0_5] : memref<136x128xf32, #tpu.memory_space<vmem>>, vector<32x128xf32>
    %c96 = arith.constant 96 : index
    %c0_6 = arith.constant 0 : index
    %5 = vector.load %arg2[%c96, %c0_6] : memref<136x128xf32, #tpu.memory_space<vmem>>, vector<32x128xf32>
    %c128 = arith.constant 128 : index
    %c0_7 = arith.constant 0 : index
    %6 = vector.load %arg2[%c128, %c0_7] : memref<136x128xf32, #tpu.memory_space<vmem>>, vector<8x128xf32>
    %7 = vector.extract_strided_slice %6 {offsets = [0, 0], sizes = [1, 96], strides = [1, 1]} : vector<8x128xf32> to vector<1x96xf32>
    %8 = vector.extract_strided_slice %6 {offsets = [1, 0], sizes = [1, 32], strides = [1, 1]} : vector<8x128xf32> to vector<1x32xf32>
    %9 = vector.extract_strided_slice %6 {offsets = [2, 0], sizes = [1, 128], strides = [1, 1]} : vector<8x128xf32> to vector<1x128xf32>
    %10 = vector.extract_strided_slice %6 {offsets = [3, 0], sizes = [1, 32], strides = [1, 1]} : vector<8x128xf32> to vector<1x32xf32>
    %c0_8 = arith.constant 0 : index
    %11 = memref.load %arg0[%c0_8] : memref<4xf32, #tpu.memory_space<smem>>
    %c1 = arith.constant 1 : index
    %12 = memref.load %arg0[%c1] : memref<4xf32, #tpu.memory_space<smem>>
    %cst = arith.constant dense<0.000000e+00> : vector<16xf32>
    %13 = vector.multi_reduction <add>, %1, %cst [1] : vector<16x32xf32> to vector<16xf32>
    %14 = vector.shape_cast %13 : vector<16xf32> to vector<16x1xf32>
    %cst_9 = arith.constant 3.200000e+01 : f32
    %15 = vector.broadcast %cst_9 : f32 to vector<16x1xf32>
    %16 = arith.divf %14, %15 : vector<16x1xf32>
    %17 = vector.broadcast %16 : vector<16x1xf32> to vector<16x32xf32>
    %18 = arith.subf %1, %17 : vector<16x32xf32>
    %19 = arith.mulf %18, %18 : vector<16x32xf32>
    %cst_10 = arith.constant dense<0.000000e+00> : vector<16xf32>
    %20 = vector.multi_reduction <add>, %19, %cst_10 [1] : vector<16x32xf32> to vector<16xf32>
    %21 = vector.shape_cast %20 : vector<16xf32> to vector<16x1xf32>
    %cst_11 = arith.constant 0.0322580636 : f32
    %22 = vector.broadcast %cst_11 : f32 to vector<16x1xf32>
    %23 = arith.mulf %21, %22 : vector<16x1xf32>
    %24 = vector.broadcast %11 : f32 to vector<16x32xf32>
    %25 = arith.mulf %24, %18 : vector<16x32xf32>
    %26 = math.sqrt %23 : vector<16x1xf32>
    %cst_12 = arith.constant 9.99999997E-7 : f32
    %27 = vector.broadcast %cst_12 : f32 to vector<16x1xf32>
    %28 = arith.addf %26, %27 : vector<16x1xf32>
    %29 = vector.broadcast %28 : vector<16x1xf32> to vector<16x32xf32>
    %30 = arith.divf %25, %29 : vector<16x32xf32>
    %31 = vector.broadcast %12 : f32 to vector<16x32xf32>
    %32 = arith.addf %30, %31 : vector<16x32xf32>
    %cst_13 = arith.constant dense<0.000000e+00> : vector<16x96xf32>
    %33 = tpu.matmul %32, %2, %cst_13 {dimension_numbers = #tpu.dot_dimension_numbers<[1], [0], [0], [1], [0, 0, 1, 1], [], []>} : vector<16x32xf32>, vector<32x96xf32>, vector<16x96xf32> -> vector<16x96xf32>
    %34 = vector.broadcast %7 : vector<1x96xf32> to vector<16x96xf32>
    %35 = arith.addf %33, %34 : vector<16x96xf32>
    %36 = vector.extract_strided_slice %35 {offsets = [0, 0], sizes = [8, 8], strides = [1, 1]} : vector<16x96xf32> to vector<8x8xf32>
    %37 = vector.extract_strided_slice %35 {offsets = [0, 32], sizes = [8, 8], strides = [1, 1]} : vector<16x96xf32> to vector<8x8xf32>
    %38 = vector.extract_strided_slice %35 {offsets = [0, 64], sizes = [8, 8], strides = [1, 1]} : vector<16x96xf32> to vector<8x8xf32>
    %cst_14 = arith.constant dense<0.000000e+00> : vector<8x8xf32>
    %39 = tpu.matmul %36, %37, %cst_14 {dimension_numbers = #tpu.dot_dimension_numbers<[1], [1], [0], [0], [0, 0, 1, 0], [], []>} : vector<8x8xf32>, vector<8x8xf32>, vector<8x8xf32> -> vector<8x8xf32>
    %cst_15 = arith.constant dense<0xFF800000> : vector<8xf32>
    %40 = vector.multi_reduction <maximumf>, %39, %cst_15 [1] : vector<8x8xf32> to vector<8xf32>
    %41 = vector.shape_cast %40 : vector<8xf32> to vector<8x1xf32>
    %42 = vector.broadcast %41 : vector<8x1xf32> to vector<8x8xf32>
    %43 = arith.subf %39, %42 : vector<8x8xf32>
    %44 = math.exp %43 : vector<8x8xf32>
    %cst_16 = arith.constant dense<0.000000e+00> : vector<8xf32>
    %45 = vector.multi_reduction <add>, %44, %cst_16 [1] : vector<8x8xf32> to vector<8xf32>
    %46 = vector.shape_cast %45 : vector<8xf32> to vector<8x1xf32>
    %47 = vector.broadcast %46 : vector<8x1xf32> to vector<8x8xf32>
    %48 = arith.divf %44, %47 : vector<8x8xf32>
    %cst_17 = arith.constant dense<0.000000e+00> : vector<8x8xf32>
    %49 = tpu.matmul %48, %38, %cst_17 {dimension_numbers = #tpu.dot_dimension_numbers<[1], [0], [0], [1], [0, 0, 1, 1], [], []>} : vector<8x8xf32>, vector<8x8xf32>, vector<8x8xf32> -> vector<8x8xf32>
    %c0_18 = arith.constant 0 : index
    %c0_19 = arith.constant 0 : index
    %50 = vector.load %arg4[%c0_18, %c0_19] : memref<16x32xf32, #tpu.memory_space<vmem>>, vector<8x8xf32>
    tpu.vector_store %arg4[%c0_18, %c0_19], %49 {strides = array<i32>} : memref<16x32xf32, #tpu.memory_space<vmem>>, vector<8x8xf32>,
    %51 = vector.extract_strided_slice %35 {offsets = [0, 8], sizes = [8, 8], strides = [1, 1]} : vector<16x96xf32> to vector<8x8xf32>
    %52 = vector.extract_strided_slice %35 {offsets = [0, 40], sizes = [8, 8], strides = [1, 1]} : vector<16x96xf32> to vector<8x8xf32>
    %53 = vector.extract_strided_slice %35 {offsets = [0, 72], sizes = [8, 8], strides = [1, 1]} : vector<16x96xf32> to vector<8x8xf32>
    %cst_20 = arith.constant dense<0.000000e+00> : vector<8x8xf32>
    %54 = tpu.matmul %51, %52, %cst_20 {dimension_numbers = #tpu.dot_dimension_numbers<[1], [1], [0], [0], [0, 0, 1, 0], [], []>} : vector<8x8xf32>, vector<8x8xf32>, vector<8x8xf32> -> vector<8x8xf32>
    %cst_21 = arith.constant dense<0xFF800000> : vector<8xf32>
    %55 = vector.multi_reduction <maximumf>, %54, %cst_21 [1] : vector<8x8xf32> to vector<8xf32>
    %56 = vector.shape_cast %55 : vector<8xf32> to vector<8x1xf32>
    %57 = vector.broadcast %56 : vector<8x1xf32> to vector<8x8xf32>
    %58 = arith.subf %54, %57 : vector<8x8xf32>
    %59 = math.exp %58 : vector<8x8xf32>
    %cst_22 = arith.constant dense<0.000000e+00> : vector<8xf32>
    %60 = vector.multi_reduction <add>, %59, %cst_22 [1] : vector<8x8xf32> to vector<8xf32>
    %61 = vector.shape_cast %60 : vector<8xf32> to vector<8x1xf32>
    %62 = vector.broadcast %61 : vector<8x1xf32> to vector<8x8xf32>
    %63 = arith.divf %59, %62 : vector<8x8xf32>
    %cst_23 = arith.constant dense<0.000000e+00> : vector<8x8xf32>
    %64 = tpu.matmul %63, %53, %cst_23 {dimension_numbers = #tpu.dot_dimension_numbers<[1], [0], [0], [1], [0, 0, 1, 1], [], []>} : vector<8x8xf32>, vector<8x8xf32>, vector<8x8xf32> -> vector<8x8xf32>
    %c0_24 = arith.constant 0 : index
    %c8 = arith.constant 8 : index
    %65 = vector.load %arg4[%c0_24, %c8] : memref<16x32xf32, #tpu.memory_space<vmem>>, vector<8x8xf32>
    tpu.vector_store %arg4[%c0_24, %c8], %64 {strides = array<i32>} : memref<16x32xf32, #tpu.memory_space<vmem>>, vector<8x8xf32>,
    %66 = vector.extract_strided_slice %35 {offsets = [0, 16], sizes = [8, 8], strides = [1, 1]} : vector<16x96xf32> to vector<8x8xf32>
    %67 = vector.extract_strided_slice %35 {offsets = [0, 48], sizes = [8, 8], strides = [1, 1]} : vector<16x96xf32> to vector<8x8xf32>
    %68 = vector.extract_strided_slice %35 {offsets = [0, 80], sizes = [8, 8], strides = [1, 1]} : vector<16x96xf32> to vector<8x8xf32>
    %cst_25 = arith.constant dense<0.000000e+00> : vector<8x8xf32>
    %69 = tpu.matmul %66, %67, %cst_25 {dimension_numbers = #tpu.dot_dimension_numbers<[1], [1], [0], [0], [0, 0, 1, 0], [], []>} : vector<8x8xf32>, vector<8x8xf32>, vector<8x8xf32> -> vector<8x8xf32>
    %cst_26 = arith.constant dense<0xFF800000> : vector<8xf32>
    %70 = vector.multi_reduction <maximumf>, %69, %cst_26 [1] : vector<8x8xf32> to vector<8xf32>
    %71 = vector.shape_cast %70 : vector<8xf32> to vector<8x1xf32>
    %72 = vector.broadcast %71 : vector<8x1xf32> to vector<8x8xf32>
    %73 = arith.subf %69, %72 : vector<8x8xf32>
    %74 = math.exp %73 : vector<8x8xf32>
    %cst_27 = arith.constant dense<0.000000e+00> : vector<8xf32>
    %75 = vector.multi_reduction <add>, %74, %cst_27 [1] : vector<8x8xf32> to vector<8xf32>
    %76 = vector.shape_cast %75 : vector<8xf32> to vector<8x1xf32>
    %77 = vector.broadcast %76 : vector<8x1xf32> to vector<8x8xf32>
    %78 = arith.divf %74, %77 : vector<8x8xf32>
    %cst_28 = arith.constant dense<0.000000e+00> : vector<8x8xf32>
    %79 = tpu.matmul %78, %68, %cst_28 {dimension_numbers = #tpu.dot_dimension_numbers<[1], [0], [0], [1], [0, 0, 1, 1], [], []>} : vector<8x8xf32>, vector<8x8xf32>, vector<8x8xf32> -> vector<8x8xf32>
    %c0_29 = arith.constant 0 : index
    %c16 = arith.constant 16 : index
    %80 = vector.load %arg4[%c0_29, %c16] : memref<16x32xf32, #tpu.memory_space<vmem>>, vector<8x8xf32>
    tpu.vector_store %arg4[%c0_29, %c16], %79 {strides = array<i32>} : memref<16x32xf32, #tpu.memory_space<vmem>>, vector<8x8xf32>,
    %81 = vector.extract_strided_slice %35 {offsets = [0, 24], sizes = [8, 8], strides = [1, 1]} : vector<16x96xf32> to vector<8x8xf32>
    %82 = vector.extract_strided_slice %35 {offsets = [0, 56], sizes = [8, 8], strides = [1, 1]} : vector<16x96xf32> to vector<8x8xf32>
    %83 = vector.extract_strided_slice %35 {offsets = [0, 88], sizes = [8, 8], strides = [1, 1]} : vector<16x96xf32> to vector<8x8xf32>
    %cst_30 = arith.constant dense<0.000000e+00> : vector<8x8xf32>
    %84 = tpu.matmul %81, %82, %cst_30 {dimension_numbers = #tpu.dot_dimension_numbers<[1], [1], [0], [0], [0, 0, 1, 0], [], []>} : vector<8x8xf32>, vector<8x8xf32>, vector<8x8xf32> -> vector<8x8xf32>
    %cst_31 = arith.constant dense<0xFF800000> : vector<8xf32>
    %85 = vector.multi_reduction <maximumf>, %84, %cst_31 [1] : vector<8x8xf32> to vector<8xf32>
    %86 = vector.shape_cast %85 : vector<8xf32> to vector<8x1xf32>
    %87 = vector.broadcast %86 : vector<8x1xf32> to vector<8x8xf32>
    %88 = arith.subf %84, %87 : vector<8x8xf32>
    %89 = math.exp %88 : vector<8x8xf32>
    %cst_32 = arith.constant dense<0.000000e+00> : vector<8xf32>
    %90 = vector.multi_reduction <add>, %89, %cst_32 [1] : vector<8x8xf32> to vector<8xf32>
    %91 = vector.shape_cast %90 : vector<8xf32> to vector<8x1xf32>
    %92 = vector.broadcast %91 : vector<8x1xf32> to vector<8x8xf32>
    %93 = arith.divf %89, %92 : vector<8x8xf32>
    %cst_33 = arith.constant dense<0.000000e+00> : vector<8x8xf32>
    %94 = tpu.matmul %93, %83, %cst_33 {dimension_numbers = #tpu.dot_dimension_numbers<[1], [0], [0], [1], [0, 0, 1, 1], [], []>} : vector<8x8xf32>, vector<8x8xf32>, vector<8x8xf32> -> vector<8x8xf32>
    %c0_34 = arith.constant 0 : index
    %c24 = arith.constant 24 : index
    %95 = vector.load %arg4[%c0_34, %c24] : memref<16x32xf32, #tpu.memory_space<vmem>>, vector<8x8xf32>
    tpu.vector_store %arg4[%c0_34, %c24], %94 {strides = array<i32>} : memref<16x32xf32, #tpu.memory_space<vmem>>, vector<8x8xf32>,
    %96 = vector.extract_strided_slice %35 {offsets = [8, 0], sizes = [8, 8], strides = [1, 1]} : vector<16x96xf32> to vector<8x8xf32>
    %97 = vector.extract_strided_slice %35 {offsets = [8, 32], sizes = [8, 8], strides = [1, 1]} : vector<16x96xf32> to vector<8x8xf32>
    %98 = vector.extract_strided_slice %35 {offsets = [8, 64], sizes = [8, 8], strides = [1, 1]} : vector<16x96xf32> to vector<8x8xf32>
    %cst_35 = arith.constant dense<0.000000e+00> : vector<8x8xf32>
    %99 = tpu.matmul %96, %97, %cst_35 {dimension_numbers = #tpu.dot_dimension_numbers<[1], [1], [0], [0], [0, 0, 1, 0], [], []>} : vector<8x8xf32>, vector<8x8xf32>, vector<8x8xf32> -> vector<8x8xf32>
    %cst_36 = arith.constant dense<0xFF800000> : vector<8xf32>
    %100 = vector.multi_reduction <maximumf>, %99, %cst_36 [1] : vector<8x8xf32> to vector<8xf32>
    %101 = vector.shape_cast %100 : vector<8xf32> to vector<8x1xf32>
    %102 = vector.broadcast %101 : vector<8x1xf32> to vector<8x8xf32>
    %103 = arith.subf %99, %102 : vector<8x8xf32>
    %104 = math.exp %103 : vector<8x8xf32>
    %cst_37 = arith.constant dense<0.000000e+00> : vector<8xf32>
    %105 = vector.multi_reduction <add>, %104, %cst_37 [1] : vector<8x8xf32> to vector<8xf32>
    %106 = vector.shape_cast %105 : vector<8xf32> to vector<8x1xf32>
    %107 = vector.broadcast %106 : vector<8x1xf32> to vector<8x8xf32>
    %108 = arith.divf %104, %107 : vector<8x8xf32>
    %cst_38 = arith.constant dense<0.000000e+00> : vector<8x8xf32>
    %109 = tpu.matmul %108, %98, %cst_38 {dimension_numbers = #tpu.dot_dimension_numbers<[1], [0], [0], [1], [0, 0, 1, 1], [], []>} : vector<8x8xf32>, vector<8x8xf32>, vector<8x8xf32> -> vector<8x8xf32>
    %c8_39 = arith.constant 8 : index
    %c0_40 = arith.constant 0 : index
    %110 = vector.load %arg4[%c8_39, %c0_40] : memref<16x32xf32, #tpu.memory_space<vmem>>, vector<8x8xf32>
    tpu.vector_store %arg4[%c8_39, %c0_40], %109 {strides = array<i32>} : memref<16x32xf32, #tpu.memory_space<vmem>>, vector<8x8xf32>,
    %111 = vector.extract_strided_slice %35 {offsets = [8, 8], sizes = [8, 8], strides = [1, 1]} : vector<16x96xf32> to vector<8x8xf32>
    %112 = vector.extract_strided_slice %35 {offsets = [8, 40], sizes = [8, 8], strides = [1, 1]} : vector<16x96xf32> to vector<8x8xf32>
    %113 = vector.extract_strided_slice %35 {offsets = [8, 72], sizes = [8, 8], strides = [1, 1]} : vector<16x96xf32> to vector<8x8xf32>
    %cst_41 = arith.constant dense<0.000000e+00> : vector<8x8xf32>
    %114 = tpu.matmul %111, %112, %cst_41 {dimension_numbers = #tpu.dot_dimension_numbers<[1], [1], [0], [0], [0, 0, 1, 0], [], []>} : vector<8x8xf32>, vector<8x8xf32>, vector<8x8xf32> -> vector<8x8xf32>
    %cst_42 = arith.constant dense<0xFF800000> : vector<8xf32>
    %115 = vector.multi_reduction <maximumf>, %114, %cst_42 [1] : vector<8x8xf32> to vector<8xf32>
    %116 = vector.shape_cast %115 : vector<8xf32> to vector<8x1xf32>
    %117 = vector.broadcast %116 : vector<8x1xf32> to vector<8x8xf32>
    %118 = arith.subf %114, %117 : vector<8x8xf32>
    %119 = math.exp %118 : vector<8x8xf32>
    %cst_43 = arith.constant dense<0.000000e+00> : vector<8xf32>
    %120 = vector.multi_reduction <add>, %119, %cst_43 [1] : vector<8x8xf32> to vector<8xf32>
    %121 = vector.shape_cast %120 : vector<8xf32> to vector<8x1xf32>
    %122 = vector.broadcast %121 : vector<8x1xf32> to vector<8x8xf32>
    %123 = arith.divf %119, %122 : vector<8x8xf32>
    %cst_44 = arith.constant dense<0.000000e+00> : vector<8x8xf32>
    %124 = tpu.matmul %123, %113, %cst_44 {dimension_numbers = #tpu.dot_dimension_numbers<[1], [0], [0], [1], [0, 0, 1, 1], [], []>} : vector<8x8xf32>, vector<8x8xf32>, vector<8x8xf32> -> vector<8x8xf32>
    %c8_45 = arith.constant 8 : index
    %c8_46 = arith.constant 8 : index
    %125 = vector.load %arg4[%c8_45, %c8_46] : memref<16x32xf32, #tpu.memory_space<vmem>>, vector<8x8xf32>
    tpu.vector_store %arg4[%c8_45, %c8_46], %124 {strides = array<i32>} : memref<16x32xf32, #tpu.memory_space<vmem>>, vector<8x8xf32>,
    %126 = vector.extract_strided_slice %35 {offsets = [8, 16], sizes = [8, 8], strides = [1, 1]} : vector<16x96xf32> to vector<8x8xf32>
    %127 = vector.extract_strided_slice %35 {offsets = [8, 48], sizes = [8, 8], strides = [1, 1]} : vector<16x96xf32> to vector<8x8xf32>
    %128 = vector.extract_strided_slice %35 {offsets = [8, 80], sizes = [8, 8], strides = [1, 1]} : vector<16x96xf32> to vector<8x8xf32>
    %cst_47 = arith.constant dense<0.000000e+00> : vector<8x8xf32>
    %129 = tpu.matmul %126, %127, %cst_47 {dimension_numbers = #tpu.dot_dimension_numbers<[1], [1], [0], [0], [0, 0, 1, 0], [], []>} : vector<8x8xf32>, vector<8x8xf32>, vector<8x8xf32> -> vector<8x8xf32>
    %cst_48 = arith.constant dense<0xFF800000> : vector<8xf32>
    %130 = vector.multi_reduction <maximumf>, %129, %cst_48 [1] : vector<8x8xf32> to vector<8xf32>
    %131 = vector.shape_cast %130 : vector<8xf32> to vector<8x1xf32>
    %132 = vector.broadcast %131 : vector<8x1xf32> to vector<8x8xf32>
    %133 = arith.subf %129, %132 : vector<8x8xf32>
    %134 = math.exp %133 : vector<8x8xf32>
    %cst_49 = arith.constant dense<0.000000e+00> : vector<8xf32>
    %135 = vector.multi_reduction <add>, %134, %cst_49 [1] : vector<8x8xf32> to vector<8xf32>
    %136 = vector.shape_cast %135 : vector<8xf32> to vector<8x1xf32>
    %137 = vector.broadcast %136 : vector<8x1xf32> to vector<8x8xf32>
    %138 = arith.divf %134, %137 : vector<8x8xf32>
    %cst_50 = arith.constant dense<0.000000e+00> : vector<8x8xf32>
    %139 = tpu.matmul %138, %128, %cst_50 {dimension_numbers = #tpu.dot_dimension_numbers<[1], [0], [0], [1], [0, 0, 1, 1], [], []>} : vector<8x8xf32>, vector<8x8xf32>, vector<8x8xf32> -> vector<8x8xf32>
    %c8_51 = arith.constant 8 : index
    %c16_52 = arith.constant 16 : index
    %140 = vector.load %arg4[%c8_51, %c16_52] : memref<16x32xf32, #tpu.memory_space<vmem>>, vector<8x8xf32>
    tpu.vector_store %arg4[%c8_51, %c16_52], %139 {strides = array<i32>} : memref<16x32xf32, #tpu.memory_space<vmem>>, vector<8x8xf32>,
    %141 = vector.extract_strided_slice %35 {offsets = [8, 24], sizes = [8, 8], strides = [1, 1]} : vector<16x96xf32> to vector<8x8xf32>
    %142 = vector.extract_strided_slice %35 {offsets = [8, 56], sizes = [8, 8], strides = [1, 1]} : vector<16x96xf32> to vector<8x8xf32>
    %143 = vector.extract_strided_slice %35 {offsets = [8, 88], sizes = [8, 8], strides = [1, 1]} : vector<16x96xf32> to vector<8x8xf32>
    %cst_53 = arith.constant dense<0.000000e+00> : vector<8x8xf32>
    %144 = tpu.matmul %141, %142, %cst_53 {dimension_numbers = #tpu.dot_dimension_numbers<[1], [1], [0], [0], [0, 0, 1, 0], [], []>} : vector<8x8xf32>, vector<8x8xf32>, vector<8x8xf32> -> vector<8x8xf32>
    %cst_54 = arith.constant dense<0xFF800000> : vector<8xf32>
    %145 = vector.multi_reduction <maximumf>, %144, %cst_54 [1] : vector<8x8xf32> to vector<8xf32>
    %146 = vector.shape_cast %145 : vector<8xf32> to vector<8x1xf32>
    %147 = vector.broadcast %146 : vector<8x1xf32> to vector<8x8xf32>
    %148 = arith.subf %144, %147 : vector<8x8xf32>
    %149 = math.exp %148 : vector<8x8xf32>
    %cst_55 = arith.constant dense<0.000000e+00> : vector<8xf32>
    %150 = vector.multi_reduction <add>, %149, %cst_55 [1] : vector<8x8xf32> to vector<8xf32>
    %151 = vector.shape_cast %150 : vector<8xf32> to vector<8x1xf32>
    %152 = vector.broadcast %151 : vector<8x1xf32> to vector<8x8xf32>
    %153 = arith.divf %149, %152 : vector<8x8xf32>
    %cst_56 = arith.constant dense<0.000000e+00> : vector<8x8xf32>
    %154 = tpu.matmul %153, %143, %cst_56 {dimension_numbers = #tpu.dot_dimension_numbers<[1], [0], [0], [1], [0, 0, 1, 1], [], []>} : vector<8x8xf32>, vector<8x8xf32>, vector<8x8xf32> -> vector<8x8xf32>
    %c8_57 = arith.constant 8 : index
    %c24_58 = arith.constant 24 : index
    %155 = vector.load %arg4[%c8_57, %c24_58] : memref<16x32xf32, #tpu.memory_space<vmem>>, vector<8x8xf32>
    tpu.vector_store %arg4[%c8_57, %c24_58], %154 {strides = array<i32>} : memref<16x32xf32, #tpu.memory_space<vmem>>, vector<8x8xf32>,
    %c0_59 = arith.constant 0 : index
    %c0_60 = arith.constant 0 : index
    %156 = vector.load %arg4[%c0_59, %c0_60] : memref<16x32xf32, #tpu.memory_space<vmem>>, vector<16x32xf32>
    %cst_61 = arith.constant dense<0.000000e+00> : vector<16x32xf32>
    %157 = tpu.matmul %156, %3, %cst_61 {dimension_numbers = #tpu.dot_dimension_numbers<[1], [0], [0], [1], [0, 0, 1, 1], [], []>} : vector<16x32xf32>, vector<32x32xf32>, vector<16x32xf32> -> vector<16x32xf32>
    %158 = vector.broadcast %8 : vector<1x32xf32> to vector<16x32xf32>
    %159 = arith.addf %157, %158 : vector<16x32xf32>
    %160 = arith.addf %1, %159 : vector<16x32xf32>
    %c2 = arith.constant 2 : index
    %161 = memref.load %arg0[%c2] : memref<4xf32, #tpu.memory_space<smem>>
    %c3 = arith.constant 3 : index
    %162 = memref.load %arg0[%c3] : memref<4xf32, #tpu.memory_space<smem>>
    %cst_62 = arith.constant dense<0.000000e+00> : vector<16xf32>
    %163 = vector.multi_reduction <add>, %160, %cst_62 [1] : vector<16x32xf32> to vector<16xf32>
    %164 = vector.shape_cast %163 : vector<16xf32> to vector<16x1xf32>
    %cst_63 = arith.constant 3.200000e+01 : f32
    %165 = vector.broadcast %cst_63 : f32 to vector<16x1xf32>
    %166 = arith.divf %164, %165 : vector<16x1xf32>
    %167 = vector.broadcast %166 : vector<16x1xf32> to vector<16x32xf32>
    %168 = arith.subf %160, %167 : vector<16x32xf32>
    %169 = arith.mulf %168, %168 : vector<16x32xf32>
    %cst_64 = arith.constant dense<0.000000e+00> : vector<16xf32>
    %170 = vector.multi_reduction <add>, %169, %cst_64 [1] : vector<16x32xf32> to vector<16xf32>
    %171 = vector.shape_cast %170 : vector<16xf32> to vector<16x1xf32>
    %cst_65 = arith.constant 0.0322580636 : f32
    %172 = vector.broadcast %cst_65 : f32 to vector<16x1xf32>
    %173 = arith.mulf %171, %172 : vector<16x1xf32>
    %174 = vector.broadcast %161 : f32 to vector<16x32xf32>
    %175 = arith.mulf %174, %168 : vector<16x32xf32>
    %176 = math.sqrt %173 : vector<16x1xf32>
    %cst_66 = arith.constant 9.99999997E-7 : f32
    %177 = vector.broadcast %cst_66 : f32 to vector<16x1xf32>
    %178 = arith.addf %176, %177 : vector<16x1xf32>
    %179 = vector.broadcast %178 : vector<16x1xf32> to vector<16x32xf32>
    %180 = arith.divf %175, %179 : vector<16x32xf32>
    %181 = vector.broadcast %162 : f32 to vector<16x32xf32>
    %182 = arith.addf %180, %181 : vector<16x32xf32>
    %cst_67 = arith.constant dense<0.000000e+00> : vector<16x128xf32>
    %183 = tpu.matmul %182, %4, %cst_67 {dimension_numbers = #tpu.dot_dimension_numbers<[1], [0], [0], [1], [0, 0, 1, 1], [], []>} : vector<16x32xf32>, vector<32x128xf32>, vector<16x128xf32> -> vector<16x128xf32>
    %184 = vector.broadcast %9 : vector<1x128xf32> to vector<16x128xf32>
    %185 = arith.addf %183, %184 : vector<16x128xf32>
    %cst_68 = arith.constant 0.000000e+00 : f32
    %186 = vector.broadcast %cst_68 : f32 to vector<16x128xf32>
    %187 = arith.maximumf %185, %186 : vector<16x128xf32>
    %cst_69 = arith.constant dense<0.000000e+00> : vector<16x32xf32>
    %188 = tpu.matmul %187, %5, %cst_69 {dimension_numbers = #tpu.dot_dimension_numbers<[1], [1], [0], [0], [0, 0, 1, 0], [], []>} : vector<16x128xf32>, vector<32x128xf32>, vector<16x32xf32> -> vector<16x32xf32>
    %189 = vector.broadcast %10 : vector<1x32xf32> to vector<16x32xf32>
    %190 = arith.addf %188, %189 : vector<16x32xf32>
    %191 = arith.addf %160, %190 : vector<16x32xf32>
    %192 = vector.shape_cast %191 : vector<16x32xf32> to vector<2x8x32xf32>
    %c0_70 = arith.constant 0 : index
    %c0_71 = arith.constant 0 : index
    %c0_72 = arith.constant 0 : index
    %193 = vector.load %arg3[%c0_70, %c0_71, %c0_72] : memref<2x8x32xf32, #tpu.memory_space<vmem>>, vector<2x8x32xf32>
    tpu.vector_store %arg3[%c0_70, %c0_71, %c0_72], %192 {strides = array<i32>} : memref<2x8x32xf32, #tpu.memory_space<vmem>>, vector<2x8x32xf32>,
    return
  }
}

</mosaic_0001>

<llo_original>
// kernel: tpu_custom_call.1
$region0: #{tpu_custom_call.1}
  #allocation0 [shape = 'u32[]', space=smem, size = 0x4, offset = 0x4, fixed_abs, tag = 'smem constant byte address 0x4 - core index']
  #allocation1 [shape = 'u32[144,128]{1,0:T(1,128)}', space=vmem, size = 0x12000, scoped, tag = 'internal scratch']
  #allocation2 [shape = 'f32[16,32]{1,0:T(8,128)}', space=vmem, size = 0x2000, scoped, tag = 'scratch operand']
  %s0 = inlined_call_operand.hbm [shape: f32[4], index: 0, kind: input, shape index: {}]
  %s1 = inlined_call_operand.hbm [shape: f32[2,8,32], index: 1, kind: input, shape index: {}]
  %s2 = inlined_call_operand.hbm [shape: f32[136,128], index: 2, kind: input, shape index: {}]
  %s3 = inlined_call_operand.hbm [shape: f32[2,8,32], index: 3, kind: output, shape index: {}]
  %s4 = sld [smem:[#allocation0]]
  $region34: #{tpu_custom_call.1} parent=0
    _
  %s6 = ssub.s32 1, %s4
  %s7 = scalar_select 0, %s6, %s4
  $region1: #{tpu_custom_call.1} parent=0
    #allocation3 [shape = 'u8[512]{0}', space=smem, size = 0x200, scoped, tag = 'input window, operand 0, single buffered']
    #allocation4 [shape = 's32[1]{0}', space=sflag, size = 0x4, scoped, tag = 'scoped memory for tpu_custom_call.1']
    #allocation5 [shape = 's32[1]{0}', space=sflag, size = 0x4, scoped, tag = 'scoped memory for tpu_custom_call.1']
    #allocation6 [shape = 's32[1]{0}', space=sflag, size = 0x4, scoped, tag = 'scoped memory for tpu_custom_call.1']
    #allocation7 [shape = 'u8[8192]{0}', space=vmem, size = 0x2000, scoped, tag = 'input window, operand 1, single buffered']
    #allocation8 [shape = 'u8[69632]{0}', space=vmem, size = 0x11000, scoped, tag = 'input window, operand 2, single buffered']
    #allocation9 [shape = 's32[1]{0}', space=sflag, size = 0x4, scoped, tag = 'scoped memory for tpu_custom_call.1']
    #allocation10 [shape = 'u8[8192]{0}', space=vmem, size = 0x2000, scoped, tag = 'output window, operand 0, single buffered']
    %8 = vsyncpa [#allocation6], 0
    %9 = vsyncpa [#allocation4], 0
    %10 = vsyncpa [#allocation9], 0
    %11 = vsyncpa [#allocation5], 0
    // Predicated region
    $region2: #{tpu_custom_call.1} parent=1 // pred_check
      _
    $region3: #{tpu_custom_call.1} parent=1 // pred_check_branch
      %13 = sbr.rel (0) target = $region5
    $region4: #{tpu_custom_call.1} parent=1 // pred_region
      %s15 = ssub.s32 16, 16
      %16 = vsyncadd [#allocation6], %s15
      %19 = dma.hbm_to_smem %s0, 16, [#allocation3], [#allocation6]
    $region5: #{tpu_custom_call.1} parent=1 // pred_fallthru
      _
    // Predicated region
    $region6: #{tpu_custom_call.1} parent=1 // pred_check
      _
    $region7: #{tpu_custom_call.1} parent=1 // pred_check_branch
      %21 = sbr.rel (0) target = $region9
    $region8: #{tpu_custom_call.1} parent=1 // pred_region
      %s23 = ssub.s32 256, 256
      %24 = vsyncadd [#allocation4], %s23
      %s25 = sshll.u32 [#allocation7], 4
      %s26 = int_to_ptr.vmem [resolvable:$true] %s25
      %31 = dma.hbm_to_vmem [thread:$0]  %s1, 256, %s26, [#allocation4], 128, 128, 8
    $region9: #{tpu_custom_call.1} parent=1 // pred_fallthru
      _
    // Predicated region
    $region10: #{tpu_custom_call.1} parent=1 // pred_check
      _
    $region11: #{tpu_custom_call.1} parent=1 // pred_check_branch
      %33 = sbr.rel (0) target = $region13
    $region12: #{tpu_custom_call.1} parent=1 // pred_region
      %s35 = ssub.s32 2176, 2176
      %36 = vsyncadd [#allocation9], %s35
      %s37 = sshll.u32 [#allocation8], 4
      %s38 = int_to_ptr.vmem [resolvable:$true] %s37
      %43 = dma.hbm_to_vmem [thread:$0]  %s2, 2176, %s38, [#allocation9], 128, 128, 8
    $region13: #{tpu_custom_call.1} parent=1 // pred_fallthru
      _
    // Predicated region
    $region14: #{tpu_custom_call.1} parent=1 // pred_check
      _
    $region15: #{tpu_custom_call.1} parent=1 // pred_check_branch
      %45 = sbr.rel (0) target = $region17
    $region16: #{tpu_custom_call.1} parent=1 // pred_region
      %46 = dma.done [#allocation6], 16
    $region17: #{tpu_custom_call.1} parent=1 // pred_fallthru
      _
    // Predicated region
    $region18: #{tpu_custom_call.1} parent=1 // pred_check
      _
    $region19: #{tpu_custom_call.1} parent=1 // pred_check_branch
      %48 = sbr.rel (0) target = $region21
    $region20: #{tpu_custom_call.1} parent=1 // pred_region
      %49 = dma.done [#allocation4], 256
    $region21: #{tpu_custom_call.1} parent=1 // pred_fallthru
      _
    // Predicated region
    $region22: #{tpu_custom_call.1} parent=1 // pred_check
      _
    $region23: #{tpu_custom_call.1} parent=1 // pred_check_branch
      %51 = sbr.rel (0) target = $region25
    $region24: #{tpu_custom_call.1} parent=1 // pred_region
      %52 = dma.done [#allocation9], 2176
    $region25: #{tpu_custom_call.1} parent=1 // pred_fallthru
      _
    %53 = sfence
    %v54 = vld [vmem:[#allocation7] sm:$0xff]
    %v55 = vld [vmem:[#allocation7 + $0x8] sm:$0xff]
    %v56 = vld [vmem:[#allocation8] sm:$0xff]
    %v57 = vld [vmem:[#allocation8 + $0x8] sm:$0xff]
    %v58 = vld [vmem:[#allocation8 + $0x10] sm:$0xff]
    %v59 = vld [vmem:[#allocation8 + $0x18] sm:$0xff]
    %v60 = vld [vmem:[#allocation8 + $0x20] sm:$0xff]
    %v61 = vld [vmem:[#allocation8 + $0x28] sm:$0xff]
    %v62 = vld [vmem:[#allocation8 + $0x30] sm:$0xff]
    %v63 = vld [vmem:[#allocation8 + $0x38] sm:$0xff]
    %v64 = vld [vmem:[#allocation8 + $0x40] sm:$0xff]
    %v65 = vld [vmem:[#allocation8 + $0x48] sm:$0xff]
    %v66 = vld [vmem:[#allocation8 + $0x50] sm:$0xff]
    %v67 = vld [vmem:[#allocation8 + $0x58] sm:$0xff]
    %v68 = vld [vmem:[#allocation8 + $0x60] sm:$0xff]
    %v69 = vld [vmem:[#allocation8 + $0x68] sm:$0xff]
    %v70 = vld [vmem:[#allocation8 + $0x70] sm:$0xff]
    %v71 = vld [vmem:[#allocation8 + $0x78] sm:$0xff]
    %v72 = vld [vmem:[#allocation8 + $0x80] sm:$0xff]
    %s73 = sld [smem:[#allocation3]]
    %s74 = sld [smem:[#allocation3 + $0x1]]
    %vm75 = vcmask 261120
    %v76 = vsel %vm75, %v54, 0.0
    %77 = vadd.xlane.f32.xlu0 %v76
    %v78 = vpop.xlane.xlu0 %77
    %v79 = vsel %vm75, %v55, 0.0
    %80 = vadd.xlane.f32.xlu0 %v79
    %v81 = vpop.xlane.xlu0 %80
    %v82 = vrcp.pop 32.0
    %v83 = vmul.f32 %v78, %v82
    %v84 = vmul.f32 %v81, %v82
    %v85 = vsub.f32 %v54, %v83
    %v86 = vsub.f32 %v55, %v84
    %v87 = vmul.f32 %v85, %v85
    %v88 = vmul.f32 %v86, %v86
    %v89 = vsel %vm75, %v87, 0.0
    %90 = vadd.xlane.f32.xlu0 %v89
    %v91 = vpop.xlane.xlu0 %90
    %v92 = vsel %vm75, %v88, 0.0
    %93 = vadd.xlane.f32.xlu0 %v92
    %v94 = vpop.xlane.xlu0 %93
    %v95 = vmul.f32 %v91, 0.032258064
    %v96 = vmul.f32 %v94, 0.032258064
    %v97 = vstv %s73
    %v98 = vmul.f32 %v97, %v85
    %v99 = vmul.f32 %v97, %v86
    %v100 = vrsqrt.pop %v95
    %v101 = vmul.f32 %v95, %v100
    %vm102 = vcmp.eq.f32.partialorder %v95, inf
    %v103 = vsel %vm102, %v95, %v101
    %vm104 = vcmp.eq.f32.partialorder %v95, 0.0
    %v105 = vand.u32 %v95, 2147483648
    %v106 = vsel %vm104, %v105, %v103
    %v107 = vrsqrt.pop %v96
    %v108 = vmul.f32 %v96, %v107
    %vm109 = vcmp.eq.f32.partialorder %v96, inf
    %v110 = vsel %vm109, %v96, %v108
    %vm111 = vcmp.eq.f32.partialorder %v96, 0.0
    %v112 = vand.u32 %v96, 2147483648
    %v113 = vsel %vm111, %v112, %v110
    %v114 = vadd.f32 %v106, 1e-06
    %v115 = vadd.f32 %v113, 1e-06
    %v116 = vrcp.pop %v114
    %v117 = vmul.f32 %v98, %v116
    %v118 = vrcp.pop %v115
    %v119 = vmul.f32 %v99, %v118
    %v120 = vstv %s74
    %v121 = vadd.f32 %v117, %v120
    %v122 = vadd.f32 %v119, %v120
    %v123 = vlaneseq
    %v124 = vshrl.u32 %v123, 7
    %v125 = vsub.s32 0, %v124
    %v126 = vrot.slane %v72, %v125
    %v128 = vsel %vm75, %v121, 0
    %v131 = vsel %vm75, %v122, 0
    %133 = vmatprep.subr.mxu0 0.0
    %134 = vmatpush1.msra.mxu0 0.0
    %135 = vmatprep.subr.mxu0 0.0
    %136 = vmatpush1.msra.mxu0 0.0
    %137 = vmatprep.subr.mxu0 0.0
    %138 = vmatpush1.msra.mxu0 0.0
    %139 = vmatprep.subr.mxu0 0.0
    %140 = vmatpush1.msra.mxu0 0.0
    %141 = vmatprep.subr.mxu0 0.0
    %142 = vmatpush1.msra.mxu0 0.0
    %143 = vmatprep.subr.mxu0 0.0
    %144 = vmatpush1.msra.mxu0 0.0
    %145 = vmatprep.subr.mxu0 0.0
    %146 = vmatpush1.msra.mxu0 0.0
    %147 = vmatprep.subr.mxu0 0.0
    %148 = vmatpush1.msra.mxu0 0.0
    %149 = vmatprep.subr.mxu0 0.0
    %150 = vmatpush1.msra.mxu0 0.0
    %151 = vmatprep.subr.mxu0 0.0
    %152 = vmatpush1.msra.mxu0 0.0
    %153 = vmatprep.subr.mxu0 0.0
    %154 = vmatpush1.msra.mxu0 0.0
    %155 = vmatprep.subr.mxu0 0.0
    %156 = vmatpush1.msra.mxu0 0.0
    %157 = vmatprep.subr.mxu0 0.0
    %158 = vmatpush1.msra.mxu0 %v59
    %159 = vmatprep.subr.mxu0 0.0
    %160 = vmatpush1.msra.mxu0 %v58
    %161 = vmatprep.subr.mxu0 0.0
    %162 = vmatpush1.msra.mxu0 %v57
    %163 = vmatprep.subr.mxu0 0.0
    %164 = vmatpush1.msra.mxu0 %v56
    %165 = vmatprep.subr.mxu0 0.0
    %166 = vmatpush2.msra.mxu0 0.0
    %167 = vmatprep.subr.mxu0 0.0
    %168 = vmatpush2.msra.mxu0 0.0
    %169 = vmatprep.subr.mxu0 0.0
    %170 = vmatpush2.msra.mxu0 0.0
    %171 = vmatprep.subr.mxu0 0.0
    %172 = vmatpush2.msra.mxu0 0.0
    %173 = vmatprep.subr.mxu0 0.0
    %174 = vmatpush2.msra.mxu0 0.0
    %175 = vmatprep.subr.mxu0 0.0
    %176 = vmatpush2.msra.mxu0 0.0
    %177 = vmatprep.subr.mxu0 0.0
    %178 = vmatpush2.msra.mxu0 0.0
    %179 = vmatprep.subr.mxu0 0.0
    %180 = vmatpush2.msra.mxu0 0.0
    %181 = vmatprep.subr.mxu0 0.0
    %182 = vmatpush2.msra.mxu0 0.0
    %183 = vmatprep.subr.mxu0 0.0
    %184 = vmatpush2.msra.mxu0 0.0
    %185 = vmatprep.subr.mxu0 0.0
    %186 = vmatpush2.msra.mxu0 0.0
    %187 = vmatprep.subr.mxu0 0.0
    %188 = vmatpush2.msra.mxu0 0.0
    %189 = vmatprep.subr.mxu0 0.0
    %190 = vmatpush2.msra.mxu0 0.0
    %191 = vmatprep.subr.mxu0 0.0
    %192 = vmatpush2.msra.mxu0 0.0
    %193 = vmatprep.subr.mxu0 0.0
    %194 = vmatpush2.msra.mxu0 0.0
    %195 = vmatprep.subr.mxu0 0.0
    %196 = vmatpush2.msra.mxu0 0.0
    %197 = vmatprep.mubr.f32.mxu0 0.0
    %198 = vmatmul.mubr.f32.gmra.mxu0 %v128
    %v199 = vpop.f32.mrf.mxu0
    %v200 = vadd.f32 %v126, %v199
    %v201 = vpop.f32.mrf.mxu0
    %202 = vmatprep.mubr.f32.mxu0 0.0
    %203 = vmatmul.mubr.f32.gmra.mxu0 %v131
    %v204 = vpop.f32.mrf.mxu0
    %v205 = vadd.f32 %v126, %v204
    %v206 = vpop.f32.mrf.mxu0
    %207 = vdwg.mxu0
    %209 = vrot.lane.b32.xlu0 %v200, 96
    %v210 = vpop.permute.xlu0 %209
    %vm211 = vcmask 64512
    %v212 = vsel %vm211, %v200, 0
    %v214 = vsel %vm211, %v210, 0
    %216 = vmatprep.subr.mxu0 0.0
    %217 = vmatpush1.xpose.msra.mxu0 0.0
    %218 = vmatprep.subr.mxu0 0.0
    %219 = vmatpush1.xpose.msra.mxu0 0.0
    %220 = vmatprep.subr.mxu0 0.0
    %221 = vmatpush1.xpose.msra.mxu0 0.0
    %222 = vmatprep.subr.mxu0 0.0
    %223 = vmatpush1.xpose.msra.mxu0 0.0
    %224 = vmatprep.subr.mxu0 0.0
    %225 = vmatpush1.xpose.msra.mxu0 0.0
    %226 = vmatprep.subr.mxu0 0.0
    %227 = vmatpush1.xpose.msra.mxu0 0.0
    %228 = vmatprep.subr.mxu0 0.0
    %229 = vmatpush1.xpose.msra.mxu0 0.0
    %230 = vmatprep.subr.mxu0 0.0
    %231 = vmatpush1.xpose.msra.mxu0 0.0
    %232 = vmatprep.subr.mxu0 0.0
    %233 = vmatpush1.xpose.msra.mxu0 0.0
    %234 = vmatprep.subr.mxu0 0.0
    %235 = vmatpush1.xpose.msra.mxu0 0.0
    %236 = vmatprep.subr.mxu0 0.0
    %237 = vmatpush1.xpose.msra.mxu0 0.0
    %238 = vmatprep.subr.mxu0 0.0
    %239 = vmatpush1.xpose.msra.mxu0 0.0
    %240 = vmatprep.subr.mxu0 0.0
    %241 = vmatpush1.xpose.msra.mxu0 0.0
    %242 = vmatprep.subr.mxu0 0.0
    %243 = vmatpush1.xpose.msra.mxu0 0.0
    %244 = vmatprep.subr.mxu0 0.0
    %245 = vmatpush1.xpose.msra.mxu0 0.0
    %246 = vmatprep.subr.mxu0 0.0
    %247 = vmatpush1.xpose.msra.mxu0 %v214
    %248 = vmatprep.subr.mxu0 0.0
    %249 = vmatpush2.xpose.msra.mxu0 0.0
    %250 = vmatprep.subr.mxu0 0.0
    %251 = vmatpush2.xpose.msra.mxu0 0.0
    %252 = vmatprep.subr.mxu0 0.0
    %253 = vmatpush2.xpose.msra.mxu0 0.0
    %254 = vmatprep.subr.mxu0 0.0
    %255 = vmatpush2.xpose.msra.mxu0 0.0
    %256 = vmatprep.subr.mxu0 0.0
    %257 = vmatpush2.xpose.msra.mxu0 0.0
    %258 = vmatprep.subr.mxu0 0.0
    %259 = vmatpush2.xpose.msra.mxu0 0.0
    %260 = vmatprep.subr.mxu0 0.0
    %261 = vmatpush2.xpose.msra.mxu0 0.0
    %262 = vmatprep.subr.mxu0 0.0
    %263 = vmatpush2.xpose.msra.mxu0 0.0
    %264 = vmatprep.subr.mxu0 0.0
    %265 = vmatpush2.xpose.msra.mxu0 0.0
    %266 = vmatprep.subr.mxu0 0.0
    %267 = vmatpush2.xpose.msra.mxu0 0.0
    %268 = vmatprep.subr.mxu0 0.0
    %269 = vmatpush2.xpose.msra.mxu0 0.0
    %270 = vmatprep.subr.mxu0 0.0
    %271 = vmatpush2.xpose.msra.mxu0 0.0
    %272 = vmatprep.subr.mxu0 0.0
    %273 = vmatpush2.xpose.msra.mxu0 0.0
    %274 = vmatprep.subr.mxu0 0.0
    %275 = vmatpush2.xpose.msra.mxu0 0.0
    %276 = vmatprep.subr.mxu0 0.0
    %277 = vmatpush2.xpose.msra.mxu0 0.0
    %278 = vmatprep.subr.mxu0 0.0
    %279 = vmatpush2.xpose.msra.mxu0 0.0
    %280 = vmatprep.mubr.f32.mxu0 0.0
    %281 = vmatmul.mubr.f32.gmra.mxu0 %v212
    %v282 = vpop.f32.mrf.mxu0
    %v283 = vadd.f32 0.0, %v282
    %v284 = vpop.f32.mrf.mxu0
    %285 = vdwg.mxu0
    %v286 = vsel %vm211, %v283, -inf
    %287 = vmax.xlane.f32.xlu0 %v286
    %v288 = vpop.xlane.xlu0 %287
    %v289 = vsub.f32 %v283, %v288
    %v290 = vmul.f32 %v289, 1.442695
    %v291 = vpow.pop %v290
    %v292 = vsel %vm211, %v291, 0.0
    %293 = vadd.xlane.f32.xlu0 %v292
    %v294 = vpop.xlane.xlu0 %293
    %v295 = vrcp.pop %v294
    %v296 = vmul.f32 %v291, %v295
    %297 = vrot.lane.b32.xlu0 %v200, 64
    %v298 = vpop.permute.xlu0 %297
    %v301 = vsel %vm211, %v296, 0
    %303 = vmatprep.subr.mxu0 0.0
    %304 = vmatpush1.msra.mxu0 0.0
    %305 = vmatprep.subr.mxu0 0.0
    %306 = vmatpush1.msra.mxu0 0.0
    %307 = vmatprep.subr.mxu0 0.0
    %308 = vmatpush1.msra.mxu0 0.0
    %309 = vmatprep.subr.mxu0 0.0
    %310 = vmatpush1.msra.mxu0 0.0
    %311 = vmatprep.subr.mxu0 0.0
    %312 = vmatpush1.msra.mxu0 0.0
    %313 = vmatprep.subr.mxu0 0.0
    %314 = vmatpush1.msra.mxu0 0.0
    %315 = vmatprep.subr.mxu0 0.0
    %316 = vmatpush1.msra.mxu0 0.0
    %317 = vmatprep.subr.mxu0 0.0
    %318 = vmatpush1.msra.mxu0 0.0
    %319 = vmatprep.subr.mxu0 0.0
    %320 = vmatpush1.msra.mxu0 0.0
    %321 = vmatprep.subr.mxu0 0.0
    %322 = vmatpush1.msra.mxu0 0.0
    %323 = vmatprep.subr.mxu0 0.0
    %324 = vmatpush1.msra.mxu0 0.0
    %325 = vmatprep.subr.mxu0 0.0
    %326 = vmatpush1.msra.mxu0 0.0
    %327 = vmatprep.subr.mxu0 0.0
    %328 = vmatpush1.msra.mxu0 0.0
    %329 = vmatprep.subr.mxu0 0.0
    %330 = vmatpush1.msra.mxu0 0.0
    %331 = vmatprep.subr.mxu0 0.0
    %332 = vmatpush1.msra.mxu0 0.0
    %333 = vmatprep.subr.mxu0 0.0
    %334 = vmatpush1.msra.mxu0 %v298
    %335 = vmatprep.subr.mxu0 0.0
    %336 = vmatpush2.msra.mxu0 0.0
    %337 = vmatprep.subr.mxu0 0.0
    %338 = vmatpush2.msra.mxu0 0.0
    %339 = vmatprep.subr.mxu0 0.0
    %340 = vmatpush2.msra.mxu0 0.0
    %341 = vmatprep.subr.mxu0 0.0
    %342 = vmatpush2.msra.mxu0 0.0
    %343 = vmatprep.subr.mxu0 0.0
    %344 = vmatpush2.msra.mxu0 0.0
    %345 = vmatprep.subr.mxu0 0.0
    %346 = vmatpush2.msra.mxu0 0.0
    %347 = vmatprep.subr.mxu0 0.0
    %348 = vmatpush2.msra.mxu0 0.0
    %349 = vmatprep.subr.mxu0 0.0
    %350 = vmatpush2.msra.mxu0 0.0
    %351 = vmatprep.subr.mxu0 0.0
    %352 = vmatpush2.msra.mxu0 0.0
    %353 = vmatprep.subr.mxu0 0.0
    %354 = vmatpush2.msra.mxu0 0.0
    %355 = vmatprep.subr.mxu0 0.0
    %356 = vmatpush2.msra.mxu0 0.0
    %357 = vmatprep.subr.mxu0 0.0
    %358 = vmatpush2.msra.mxu0 0.0
    %359 = vmatprep.subr.mxu0 0.0
    %360 = vmatpush2.msra.mxu0 0.0
    %361 = vmatprep.subr.mxu0 0.0
    %362 = vmatpush2.msra.mxu0 0.0
    %363 = vmatprep.subr.mxu0 0.0
    %364 = vmatpush2.msra.mxu0 0.0
    %365 = vmatprep.subr.mxu0 0.0
    %366 = vmatpush2.msra.mxu0 0.0
    %367 = vmatprep.mubr.f32.mxu0 0.0
    %368 = vmatmul.mubr.f32.gmra.mxu0 %v301
    %v369 = vpop.f32.mrf.mxu0
    %v370 = vadd.f32 0.0, %v369
    %v371 = vpop.f32.mrf.mxu0
    %372 = vdwg.mxu0
    %373 = vst.msk [vmem:[#allocation2] sm:$0xff] %vm211, %v370
    %374 = vrot.lane.b32.xlu0 %v200, 120
    %v375 = vpop.permute.xlu0 %374
    %376 = vrot.lane.b32.xlu0 %v200, 88
    %v377 = vpop.permute.xlu0 %376
    %v378 = vsel %vm211, %v375, 0
    %v380 = vsel %vm211, %v377, 0
    %382 = vmatprep.subr.mxu0 0.0
    %383 = vmatpush1.xpose.msra.mxu0 0.0
    %384 = vmatprep.subr.mxu0 0.0
    %385 = vmatpush1.xpose.msra.mxu0 0.0
    %386 = vmatprep.subr.mxu0 0.0
    %387 = vmatpush1.xpose.msra.mxu0 0.0
    %388 = vmatprep.subr.mxu0 0.0
    %389 = vmatpush1.xpose.msra.mxu0 0.0
    %390 = vmatprep.subr.mxu0 0.0
    %391 = vmatpush1.xpose.msra.mxu0 0.0
    %392 = vmatprep.subr.mxu0 0.0
    %393 = vmatpush1.xpose.msra.mxu0 0.0
    %394 = vmatprep.subr.mxu0 0.0
    %395 = vmatpush1.xpose.msra.mxu0 0.0
    %396 = vmatprep.subr.mxu0 0.0
    %397 = vmatpush1.xpose.msra.mxu0 0.0
    %398 = vmatprep.subr.mxu0 0.0
    %399 = vmatpush1.xpose.msra.mxu0 0.0
    %400 = vmatprep.subr.mxu0 0.0
    %401 = vmatpush1.xpose.msra.mxu0 0.0
    %402 = vmatprep.subr.mxu0 0.0
    %403 = vmatpush1.xpose.msra.mxu0 0.0
    %404 = vmatprep.subr.mxu0 0.0
    %405 = vmatpush1.xpose.msra.mxu0 0.0
    %406 = vmatprep.subr.mxu0 0.0
    %407 = vmatpush1.xpose.msra.mxu0 0.0
    %408 = vmatprep.subr.mxu0 0.0
    %409 = vmatpush1.xpose.msra.mxu0 0.0
    %410 = vmatprep.subr.mxu0 0.0
    %411 = vmatpush1.xpose.msra.mxu0 0.0
    %412 = vmatprep.subr.mxu0 0.0
    %413 = vmatpush1.xpose.msra.mxu0 %v380
    %414 = vmatprep.subr.mxu0 0.0
    %415 = vmatpush2.xpose.msra.mxu0 0.0
    %416 = vmatprep.subr.mxu0 0.0
    %417 = vmatpush2.xpose.msra.mxu0 0.0
    %418 = vmatprep.subr.mxu0 0.0
    %419 = vmatpush2.xpose.msra.mxu0 0.0
    %420 = vmatprep.subr.mxu0 0.0
    %421 = vmatpush2.xpose.msra.mxu0 0.0
    %422 = vmatprep.subr.mxu0 0.0
    %423 = vmatpush2.xpose.msra.mxu0 0.0
    %424 = vmatprep.subr.mxu0 0.0
    %425 = vmatpush2.xpose.msra.mxu0 0.0
    %426 = vmatprep.subr.mxu0 0.0
    %427 = vmatpush2.xpose.msra.mxu0 0.0
    %428 = vmatprep.subr.mxu0 0.0
    %429 = vmatpush2.xpose.msra.mxu0 0.0
    %430 = vmatprep.subr.mxu0 0.0
    %431 = vmatpush2.xpose.msra.mxu0 0.0
    %432 = vmatprep.subr.mxu0 0.0
    %433 = vmatpush2.xpose.msra.mxu0 0.0
    %434 = vmatprep.subr.mxu0 0.0
    %435 = vmatpush2.xpose.msra.mxu0 0.0
    %436 = vmatprep.subr.mxu0 0.0
    %437 = vmatpush2.xpose.msra.mxu0 0.0
    %438 = vmatprep.subr.mxu0 0.0
    %439 = vmatpush2.xpose.msra.mxu0 0.0
    %440 = vmatprep.subr.mxu0 0.0
    %441 = vmatpush2.xpose.msra.mxu0 0.0
    %442 = vmatprep.subr.mxu0 0.0
    %443 = vmatpush2.xpose.msra.mxu0 0.0
    %444 = vmatprep.subr.mxu0 0.0
    %445 = vmatpush2.xpose.msra.mxu0 0.0
    %446 = vmatprep.mubr.f32.mxu0 0.0
    %447 = vmatmul.mubr.f32.gmra.mxu0 %v378
    %v448 = vpop.f32.mrf.mxu0
    %v449 = vadd.f32 0.0, %v448
    %v450 = vpop.f32.mrf.mxu0
    %451 = vdwg.mxu0
    %v452 = vsel %vm211, %v449, -inf
    %453 = vmax.xlane.f32.xlu0 %v452
    %v454 = vpop.xlane.xlu0 %453
    %v455 = vsub.f32 %v449, %v454
    %v456 = vmul.f32 %v455, 1.442695
    %v457 = vpow.pop %v456
    %v458 = vsel %vm211, %v457, 0.0
    %459 = vadd.xlane.f32.xlu0 %v458
    %v460 = vpop.xlane.xlu0 %459
    %v461 = vrcp.pop %v460
    %v462 = vmul.f32 %v457, %v461
    %463 = vrot.lane.b32.xlu0 %v200, 56
    %v464 = vpop.permute.xlu0 %463
    %v467 = vsel %vm211, %v462, 0
    %469 = vmatprep.subr.mxu0 0.0
    %470 = vmatpush1.msra.mxu0 0.0
    %471 = vmatprep.subr.mxu0 0.0
    %472 = vmatpush1.msra.mxu0 0.0
    %473 = vmatprep.subr.mxu0 0.0
    %474 = vmatpush1.msra.mxu0 0.0
    %475 = vmatprep.subr.mxu0 0.0
    %476 = vmatpush1.msra.mxu0 0.0
    %477 = vmatprep.subr.mxu0 0.0
    %478 = vmatpush1.msra.mxu0 0.0
    %479 = vmatprep.subr.mxu0 0.0
    %480 = vmatpush1.msra.mxu0 0.0
    %481 = vmatprep.subr.mxu0 0.0
    %482 = vmatpush1.msra.mxu0 0.0
    %483 = vmatprep.subr.mxu0 0.0
    %484 = vmatpush1.msra.mxu0 0.0
    %485 = vmatprep.subr.mxu0 0.0
    %486 = vmatpush1.msra.mxu0 0.0
    %487 = vmatprep.subr.mxu0 0.0
    %488 = vmatpush1.msra.mxu0 0.0
    %489 = vmatprep.subr.mxu0 0.0
    %490 = vmatpush1.msra.mxu0 0.0
    %491 = vmatprep.subr.mxu0 0.0
    %492 = vmatpush1.msra.mxu0 0.0
    %493 = vmatprep.subr.mxu0 0.0
    %494 = vmatpush1.msra.mxu0 0.0
    %495 = vmatprep.subr.mxu0 0.0
    %496 = vmatpush1.msra.mxu0 0.0
    %497 = vmatprep.subr.mxu0 0.0
    %498 = vmatpush1.msra.mxu0 0.0
    %499 = vmatprep.subr.mxu0 0.0
    %500 = vmatpush1.msra.mxu0 %v464
    %501 = vmatprep.subr.mxu0 0.0
    %502 = vmatpush2.msra.mxu0 0.0
    %503 = vmatprep.subr.mxu0 0.0
    %504 = vmatpush2.msra.mxu0 0.0
    %505 = vmatprep.subr.mxu0 0.0
    %506 = vmatpush2.msra.mxu0 0.0
    %507 = vmatprep.subr.mxu0 0.0
    %508 = vmatpush2.msra.mxu0 0.0
    %509 = vmatprep.subr.mxu0 0.0
    %510 = vmatpush2.msra.mxu0 0.0
    %511 = vmatprep.subr.mxu0 0.0
    %512 = vmatpush2.msra.mxu0 0.0
    %513 = vmatprep.subr.mxu0 0.0
    %514 = vmatpush2.msra.mxu0 0.0
    %515 = vmatprep.subr.mxu0 0.0
    %516 = vmatpush2.msra.mxu0 0.0
    %517 = vmatprep.subr.mxu0 0.0
    %518 = vmatpush2.msra.mxu0 0.0
    %519 = vmatprep.subr.mxu0 0.0
    %520 = vmatpush2.msra.mxu0 0.0
    %521 = vmatprep.subr.mxu0 0.0
    %522 = vmatpush2.msra.mxu0 0.0
    %523 = vmatprep.subr.mxu0 0.0
    %524 = vmatpush2.msra.mxu0 0.0
    %525 = vmatprep.subr.mxu0 0.0
    %526 = vmatpush2.msra.mxu0 0.0
    %527 = vmatprep.subr.mxu0 0.0
    %528 = vmatpush2.msra.mxu0 0.0
    %529 = vmatprep.subr.mxu0 0.0
    %530 = vmatpush2.msra.mxu0 0.0
    %531 = vmatprep.subr.mxu0 0.0
    %532 = vmatpush2.msra.mxu0 0.0
    %533 = vmatprep.mubr.f32.mxu0 0.0
    %534 = vmatmul.mubr.f32.gmra.mxu0 %v467
    %v535 = vpop.f32.mrf.mxu0
    %v536 = vadd.f32 0.0, %v535
    %v537 = vpop.f32.mrf.mxu0
    %538 = vdwg.mxu0
    %540 = vrot.lane.b32.xlu0 %v536, 8
    %v541 = vpop.permute.xlu0 %540
    %vm543 = vcmask 130112
    %544 = vst.msk [vmem:[#allocation2] sm:$0xff] %vm543, %v541
    %545 = vrot.lane.b32.xlu0 %v200, 112
    %v546 = vpop.permute.xlu0 %545
    %547 = vrot.lane.b32.xlu0 %v200, 80
    %v548 = vpop.permute.xlu0 %547
    %v549 = vsel %vm211, %v546, 0
    %v551 = vsel %vm211, %v548, 0
    %553 = vmatprep.subr.mxu0 0.0
    %554 = vmatpush1.xpose.msra.mxu0 0.0
    %555 = vmatprep.subr.mxu0 0.0
    %556 = vmatpush1.xpose.msra.mxu0 0.0
    %557 = vmatprep.subr.mxu0 0.0
    %558 = vmatpush1.xpose.msra.mxu0 0.0
    %559 = vmatprep.subr.mxu0 0.0
    %560 = vmatpush1.xpose.msra.mxu0 0.0
    %561 = vmatprep.subr.mxu0 0.0
    %562 = vmatpush1.xpose.msra.mxu0 0.0
    %563 = vmatprep.subr.mxu0 0.0
    %564 = vmatpush1.xpose.msra.mxu0 0.0
    %565 = vmatprep.subr.mxu0 0.0
    %566 = vmatpush1.xpose.msra.mxu0 0.0
    %567 = vmatprep.subr.mxu0 0.0
    %568 = vmatpush1.xpose.msra.mxu0 0.0
    %569 = vmatprep.subr.mxu0 0.0
    %570 = vmatpush1.xpose.msra.mxu0 0.0
    %571 = vmatprep.subr.mxu0 0.0
    %572 = vmatpush1.xpose.msra.mxu0 0.0
    %573 = vmatprep.subr.mxu0 0.0
    %574 = vmatpush1.xpose.msra.mxu0 0.0
    %575 = vmatprep.subr.mxu0 0.0
    %576 = vmatpush1.xpose.msra.mxu0 0.0
    %577 = vmatprep.subr.mxu0 0.0
    %578 = vmatpush1.xpose.msra.mxu0 0.0
    %579 = vmatprep.subr.mxu0 0.0
    %580 = vmatpush1.xpose.msra.mxu0 0.0
    %581 = vmatprep.subr.mxu0 0.0
    %582 = vmatpush1.xpose.msra.mxu0 0.0
    %583 = vmatprep.subr.mxu0 0.0
    %584 = vmatpush1.xpose.msra.mxu0 %v551
    %585 = vmatprep.subr.mxu0 0.0
    %586 = vmatpush2.xpose.msra.mxu0 0.0
    %587 = vmatprep.subr.mxu0 0.0
    %588 = vmatpush2.xpose.msra.mxu0 0.0
    %589 = vmatprep.subr.mxu0 0.0
    %590 = vmatpush2.xpose.msra.mxu0 0.0
    %591 = vmatprep.subr.mxu0 0.0
    %592 = vmatpush2.xpose.msra.mxu0 0.0
    %593 = vmatprep.subr.mxu0 0.0
    %594 = vmatpush2.xpose.msra.mxu0 0.0
    %595 = vmatprep.subr.mxu0 0.0
    %596 = vmatpush2.xpose.msra.mxu0 0.0
    %597 = vmatprep.subr.mxu0 0.0
    %598 = vmatpush2.xpose.msra.mxu0 0.0
    %599 = vmatprep.subr.mxu0 0.0
    %600 = vmatpush2.xpose.msra.mxu0 0.0
    %601 = vmatprep.subr.mxu0 0.0
    %602 = vmatpush2.xpose.msra.mxu0 0.0
    %603 = vmatprep.subr.mxu0 0.0
    %604 = vmatpush2.xpose.msra.mxu0 0.0
    %605 = vmatprep.subr.mxu0 0.0
    %606 = vmatpush2.xpose.msra.mxu0 0.0
    %607 = vmatprep.subr.mxu0 0.0
    %608 = vmatpush2.xpose.msra.mxu0 0.0
    %609 = vmatprep.subr.mxu0 0.0
    %610 = vmatpush2.xpose.msra.mxu0 0.0
    %611 = vmatprep.subr.mxu0 0.0
    %612 = vmatpush2.xpose.msra.mxu0 0.0
    %613 = vmatprep.subr.mxu0 0.0
    %614 = vmatpush2.xpose.msra.mxu0 0.0
    %615 = vmatprep.subr.mxu0 0.0
    %616 = vmatpush2.xpose.msra.mxu0 0.0
    %617 = vmatprep.mubr.f32.mxu0 0.0
    %618 = vmatmul.mubr.f32.gmra.mxu0 %v549
    %v619 = vpop.f32.mrf.mxu0
    %v620 = vadd.f32 0.0, %v619
    %v621 = vpop.f32.mrf.mxu0
    %622 = vdwg.mxu0
    %v623 = vsel %vm211, %v620, -inf
    %624 = vmax.xlane.f32.xlu0 %v623
    %v625 = vpop.xlane.xlu0 %624
    %v626 = vsub.f32 %v620, %v625
    %v627 = vmul.f32 %v626, 1.442695
    %v628 = vpow.pop %v627
    %v629 = vsel %vm211, %v628, 0.0
    %630 = vadd.xlane.f32.xlu0 %v629
    %v631 = vpop.xlane.xlu0 %630
    %v632 = vrcp.pop %v631
    %v633 = vmul.f32 %v628, %v632
    %634 = vrot.lane.b32.xlu0 %v200, 48
    %v635 = vpop.permute.xlu0 %634
    %v638 = vsel %vm211, %v633, 0
    %640 = vmatprep.subr.mxu0 0.0
    %641 = vmatpush1.msra.mxu0 0.0
    %642 = vmatprep.subr.mxu0 0.0
    %643 = vmatpush1.msra.mxu0 0.0
    %644 = vmatprep.subr.mxu0 0.0
    %645 = vmatpush1.msra.mxu0 0.0
    %646 = vmatprep.subr.mxu0 0.0
    %647 = vmatpush1.msra.mxu0 0.0
    %648 = vmatprep.subr.mxu0 0.0
    %649 = vmatpush1.msra.mxu0 0.0
    %650 = vmatprep.subr.mxu0 0.0
    %651 = vmatpush1.msra.mxu0 0.0
    %652 = vmatprep.subr.mxu0 0.0
    %653 = vmatpush1.msra.mxu0 0.0
    %654 = vmatprep.subr.mxu0 0.0
    %655 = vmatpush1.msra.mxu0 0.0
    %656 = vmatprep.subr.mxu0 0.0
    %657 = vmatpush1.msra.mxu0 0.0
    %658 = vmatprep.subr.mxu0 0.0
    %659 = vmatpush1.msra.mxu0 0.0
    %660 = vmatprep.subr.mxu0 0.0
    %661 = vmatpush1.msra.mxu0 0.0
    %662 = vmatprep.subr.mxu0 0.0
    %663 = vmatpush1.msra.mxu0 0.0
    %664 = vmatprep.subr.mxu0 0.0
    %665 = vmatpush1.msra.mxu0 0.0
    %666 = vmatprep.subr.mxu0 0.0
    %667 = vmatpush1.msra.mxu0 0.0
    %668 = vmatprep.subr.mxu0 0.0
    %669 = vmatpush1.msra.mxu0 0.0
    %670 = vmatprep.subr.mxu0 0.0
    %671 = vmatpush1.msra.mxu0 %v635
    %672 = vmatprep.subr.mxu0 0.0
    %673 = vmatpush2.msra.mxu0 0.0
    %674 = vmatprep.subr.mxu0 0.0
    %675 = vmatpush2.msra.mxu0 0.0
    %676 = vmatprep.subr.mxu0 0.0
    %677 = vmatpush2.msra.mxu0 0.0
    %678 = vmatprep.subr.mxu0 0.0
    %679 = vmatpush2.msra.mxu0 0.0
    %680 = vmatprep.subr.mxu0 0.0
    %681 = vmatpush2.msra.mxu0 0.0
    %682 = vmatprep.subr.mxu0 0.0
    %683 = vmatpush2.msra.mxu0 0.0
    %684 = vmatprep.subr.mxu0 0.0
    %685 = vmatpush2.msra.mxu0 0.0
    %686 = vmatprep.subr.mxu0 0.0
    %687 = vmatpush2.msra.mxu0 0.0
    %688 = vmatprep.subr.mxu0 0.0
    %689 = vmatpush2.msra.mxu0 0.0
    %690 = vmatprep.subr.mxu0 0.0
    %691 = vmatpush2.msra.mxu0 0.0
    %692 = vmatprep.subr.mxu0 0.0
    %693 = vmatpush2.msra.mxu0 0.0
    %694 = vmatprep.subr.mxu0 0.0
    %695 = vmatpush2.msra.mxu0 0.0
    %696 = vmatprep.subr.mxu0 0.0
    %697 = vmatpush2.msra.mxu0 0.0
    %698 = vmatprep.subr.mxu0 0.0
    %699 = vmatpush2.msra.mxu0 0.0
    %700 = vmatprep.subr.mxu0 0.0
    %701 = vmatpush2.msra.mxu0 0.0
    %702 = vmatprep.subr.mxu0 0.0
    %703 = vmatpush2.msra.mxu0 0.0
    %704 = vmatprep.mubr.f32.mxu0 0.0
    %705 = vmatmul.mubr.f32.gmra.mxu0 %v638
    %v706 = vpop.f32.mrf.mxu0
    %v707 = vadd.f32 0.0, %v706
    %v708 = vpop.f32.mrf.mxu0
    %709 = vdwg.mxu0
    %711 = vrot.lane.b32.xlu0 %v707, 16
    %v712 = vpop.permute.xlu0 %711
    %vm714 = vcmask 195712
    %715 = vst.msk [vmem:[#allocation2] sm:$0xff] %vm714, %v712
    %716 = vrot.lane.b32.xlu0 %v200, 104
    %v717 = vpop.permute.xlu0 %716
    %718 = vrot.lane.b32.xlu0 %v200, 72
    %v719 = vpop.permute.xlu0 %718
    %v720 = vsel %vm211, %v717, 0
    %v722 = vsel %vm211, %v719, 0
    %724 = vmatprep.subr.mxu0 0.0
    %725 = vmatpush1.xpose.msra.mxu0 0.0
    %726 = vmatprep.subr.mxu0 0.0
    %727 = vmatpush1.xpose.msra.mxu0 0.0
    %728 = vmatprep.subr.mxu0 0.0
    %729 = vmatpush1.xpose.msra.mxu0 0.0
    %730 = vmatprep.subr.mxu0 0.0
    %731 = vmatpush1.xpose.msra.mxu0 0.0
    %732 = vmatprep.subr.mxu0 0.0
    %733 = vmatpush1.xpose.msra.mxu0 0.0
    %734 = vmatprep.subr.mxu0 0.0
    %735 = vmatpush1.xpose.msra.mxu0 0.0
    %736 = vmatprep.subr.mxu0 0.0
    %737 = vmatpush1.xpose.msra.mxu0 0.0
    %738 = vmatprep.subr.mxu0 0.0
    %739 = vmatpush1.xpose.msra.mxu0 0.0
    %740 = vmatprep.subr.mxu0 0.0
    %741 = vmatpush1.xpose.msra.mxu0 0.0
    %742 = vmatprep.subr.mxu0 0.0
    %743 = vmatpush1.xpose.msra.mxu0 0.0
    %744 = vmatprep.subr.mxu0 0.0
    %745 = vmatpush1.xpose.msra.mxu0 0.0
    %746 = vmatprep.subr.mxu0 0.0
    %747 = vmatpush1.xpose.msra.mxu0 0.0
    %748 = vmatprep.subr.mxu0 0.0
    %749 = vmatpush1.xpose.msra.mxu0 0.0
    %750 = vmatprep.subr.mxu0 0.0
    %751 = vmatpush1.xpose.msra.mxu0 0.0
    %752 = vmatprep.subr.mxu0 0.0
    %753 = vmatpush1.xpose.msra.mxu0 0.0
    %754 = vmatprep.subr.mxu0 0.0
    %755 = vmatpush1.xpose.msra.mxu0 %v722
    %756 = vmatprep.subr.mxu0 0.0
    %757 = vmatpush2.xpose.msra.mxu0 0.0
    %758 = vmatprep.subr.mxu0 0.0
    %759 = vmatpush2.xpose.msra.mxu0 0.0
    %760 = vmatprep.subr.mxu0 0.0
    %761 = vmatpush2.xpose.msra.mxu0 0.0
    %762 = vmatprep.subr.mxu0 0.0
    %763 = vmatpush2.xpose.msra.mxu0 0.0
    %764 = vmatprep.subr.mxu0 0.0
    %765 = vmatpush2.xpose.msra.mxu0 0.0
    %766 = vmatprep.subr.mxu0 0.0
    %767 = vmatpush2.xpose.msra.mxu0 0.0
    %768 = vmatprep.subr.mxu0 0.0
    %769 = vmatpush2.xpose.msra.mxu0 0.0
    %770 = vmatprep.subr.mxu0 0.0
    %771 = vmatpush2.xpose.msra.mxu0 0.0
    %772 = vmatprep.subr.mxu0 0.0
    %773 = vmatpush2.xpose.msra.mxu0 0.0
    %774 = vmatprep.subr.mxu0 0.0
    %775 = vmatpush2.xpose.msra.mxu0 0.0
    %776 = vmatprep.subr.mxu0 0.0
    %777 = vmatpush2.xpose.msra.mxu0 0.0
    %778 = vmatprep.subr.mxu0 0.0
    %779 = vmatpush2.xpose.msra.mxu0 0.0
    %780 = vmatprep.subr.mxu0 0.0
    %781 = vmatpush2.xpose.msra.mxu0 0.0
    %782 = vmatprep.subr.mxu0 0.0
    %783 = vmatpush2.xpose.msra.mxu0 0.0
    %784 = vmatprep.subr.mxu0 0.0
    %785 = vmatpush2.xpose.msra.mxu0 0.0
    %786 = vmatprep.subr.mxu0 0.0
    %787 = vmatpush2.xpose.msra.mxu0 0.0
    %788 = vmatprep.mubr.f32.mxu0 0.0
    %789 = vmatmul.mubr.f32.gmra.mxu0 %v720
    %v790 = vpop.f32.mrf.mxu0
    %v791 = vadd.f32 0.0, %v790
    %v792 = vpop.f32.mrf.mxu0
    %793 = vdwg.mxu0
    %v794 = vsel %vm211, %v791, -inf
    %795 = vmax.xlane.f32.xlu0 %v794
    %v796 = vpop.xlane.xlu0 %795
    %v797 = vsub.f32 %v791, %v796
    %v798 = vmul.f32 %v797, 1.442695
    %v799 = vpow.pop %v798
    %v800 = vsel %vm211, %v799, 0.0
    %801 = vadd.xlane.f32.xlu0 %v800
    %v802 = vpop.xlane.xlu0 %801
    %v803 = vrcp.pop %v802
    %v804 = vmul.f32 %v799, %v803
    %805 = vrot.lane.b32.xlu0 %v200, 40
    %v806 = vpop.permute.xlu0 %805
    %v809 = vsel %vm211, %v804, 0
    %811 = vmatprep.subr.mxu0 0.0
    %812 = vmatpush1.msra.mxu0 0.0
    %813 = vmatprep.subr.mxu0 0.0
    %814 = vmatpush1.msra.mxu0 0.0
    %815 = vmatprep.subr.mxu0 0.0
    %816 = vmatpush1.msra.mxu0 0.0
    %817 = vmatprep.subr.mxu0 0.0
    %818 = vmatpush1.msra.mxu0 0.0
    %819 = vmatprep.subr.mxu0 0.0
    %820 = vmatpush1.msra.mxu0 0.0
    %821 = vmatprep.subr.mxu0 0.0
    %822 = vmatpush1.msra.mxu0 0.0
    %823 = vmatprep.subr.mxu0 0.0
    %824 = vmatpush1.msra.mxu0 0.0
    %825 = vmatprep.subr.mxu0 0.0
    %826 = vmatpush1.msra.mxu0 0.0
    %827 = vmatprep.subr.mxu0 0.0
    %828 = vmatpush1.msra.mxu0 0.0
    %829 = vmatprep.subr.mxu0 0.0
    %830 = vmatpush1.msra.mxu0 0.0
    %831 = vmatprep.subr.mxu0 0.0
    %832 = vmatpush1.msra.mxu0 0.0
    %833 = vmatprep.subr.mxu0 0.0
    %834 = vmatpush1.msra.mxu0 0.0
    %835 = vmatprep.subr.mxu0 0.0
    %836 = vmatpush1.msra.mxu0 0.0
    %837 = vmatprep.subr.mxu0 0.0
    %838 = vmatpush1.msra.mxu0 0.0
    %839 = vmatprep.subr.mxu0 0.0
    %840 = vmatpush1.msra.mxu0 0.0
    %841 = vmatprep.subr.mxu0 0.0
    %842 = vmatpush1.msra.mxu0 %v806
    %843 = vmatprep.subr.mxu0 0.0
    %844 = vmatpush2.msra.mxu0 0.0
    %845 = vmatprep.subr.mxu0 0.0
    %846 = vmatpush2.msra.mxu0 0.0
    %847 = vmatprep.subr.mxu0 0.0
    %848 = vmatpush2.msra.mxu0 0.0
    %849 = vmatprep.subr.mxu0 0.0
    %850 = vmatpush2.msra.mxu0 0.0
    %851 = vmatprep.subr.mxu0 0.0
    %852 = vmatpush2.msra.mxu0 0.0
    %853 = vmatprep.subr.mxu0 0.0
    %854 = vmatpush2.msra.mxu0 0.0
    %855 = vmatprep.subr.mxu0 0.0
    %856 = vmatpush2.msra.mxu0 0.0
    %857 = vmatprep.subr.mxu0 0.0
    %858 = vmatpush2.msra.mxu0 0.0
    %859 = vmatprep.subr.mxu0 0.0
    %860 = vmatpush2.msra.mxu0 0.0
    %861 = vmatprep.subr.mxu0 0.0
    %862 = vmatpush2.msra.mxu0 0.0
    %863 = vmatprep.subr.mxu0 0.0
    %864 = vmatpush2.msra.mxu0 0.0
    %865 = vmatprep.subr.mxu0 0.0
    %866 = vmatpush2.msra.mxu0 0.0
    %867 = vmatprep.subr.mxu0 0.0
    %868 = vmatpush2.msra.mxu0 0.0
    %869 = vmatprep.subr.mxu0 0.0
    %870 = vmatpush2.msra.mxu0 0.0
    %871 = vmatprep.subr.mxu0 0.0
    %872 = vmatpush2.msra.mxu0 0.0
    %873 = vmatprep.subr.mxu0 0.0
    %874 = vmatpush2.msra.mxu0 0.0
    %875 = vmatprep.mubr.f32.mxu0 0.0
    %876 = vmatmul.mubr.f32.gmra.mxu0 %v809
    %v877 = vpop.f32.mrf.mxu0
    %v878 = vadd.f32 0.0, %v877
    %v879 = vpop.f32.mrf.mxu0
    %880 = vdwg.mxu0
    %882 = vrot.lane.b32.xlu0 %v878, 24
    %v883 = vpop.permute.xlu0 %882
    %vm885 = vcmask 261312
    %886 = vst.msk [vmem:[#allocation2] sm:$0xff] %vm885, %v883
    %888 = vrot.lane.b32.xlu0 %v205, 96
    %v889 = vpop.permute.xlu0 %888
    %v890 = vsel %vm211, %v205, 0
    %v892 = vsel %vm211, %v889, 0
    %894 = vmatprep.subr.mxu0 0.0
    %895 = vmatpush1.xpose.msra.mxu0 0.0
    %896 = vmatprep.subr.mxu0 0.0
    %897 = vmatpush1.xpose.msra.mxu0 0.0
    %898 = vmatprep.subr.mxu0 0.0
    %899 = vmatpush1.xpose.msra.mxu0 0.0
    %900 = vmatprep.subr.mxu0 0.0
    %901 = vmatpush1.xpose.msra.mxu0 0.0
    %902 = vmatprep.subr.mxu0 0.0
    %903 = vmatpush1.xpose.msra.mxu0 0.0
    %904 = vmatprep.subr.mxu0 0.0
    %905 = vmatpush1.xpose.msra.mxu0 0.0
    %906 = vmatprep.subr.mxu0 0.0
    %907 = vmatpush1.xpose.msra.mxu0 0.0
    %908 = vmatprep.subr.mxu0 0.0
    %909 = vmatpush1.xpose.msra.mxu0 0.0
    %910 = vmatprep.subr.mxu0 0.0
    %911 = vmatpush1.xpose.msra.mxu0 0.0
    %912 = vmatprep.subr.mxu0 0.0
    %913 = vmatpush1.xpose.msra.mxu0 0.0
    %914 = vmatprep.subr.mxu0 0.0
    %915 = vmatpush1.xpose.msra.mxu0 0.0
    %916 = vmatprep.subr.mxu0 0.0
    %917 = vmatpush1.xpose.msra.mxu0 0.0
    %918 = vmatprep.subr.mxu0 0.0
    %919 = vmatpush1.xpose.msra.mxu0 0.0
    %920 = vmatprep.subr.mxu0 0.0
    %921 = vmatpush1.xpose.msra.mxu0 0.0
    %922 = vmatprep.subr.mxu0 0.0
    %923 = vmatpush1.xpose.msra.mxu0 0.0
    %924 = vmatprep.subr.mxu0 0.0
    %925 = vmatpush1.xpose.msra.mxu0 %v892
    %926 = vmatprep.subr.mxu0 0.0
    %927 = vmatpush2.xpose.msra.mxu0 0.0
    %928 = vmatprep.subr.mxu0 0.0
    %929 = vmatpush2.xpose.msra.mxu0 0.0
    %930 = vmatprep.subr.mxu0 0.0
    %931 = vmatpush2.xpose.msra.mxu0 0.0
    %932 = vmatprep.subr.mxu0 0.0
    %933 = vmatpush2.xpose.msra.mxu0 0.0
    %934 = vmatprep.subr.mxu0 0.0
    %935 = vmatpush2.xpose.msra.mxu0 0.0
    %936 = vmatprep.subr.mxu0 0.0
    %937 = vmatpush2.xpose.msra.mxu0 0.0
    %938 = vmatprep.subr.mxu0 0.0
    %939 = vmatpush2.xpose.msra.mxu0 0.0
    %940 = vmatprep.subr.mxu0 0.0
    %941 = vmatpush2.xpose.msra.mxu0 0.0
    %942 = vmatprep.subr.mxu0 0.0
    %943 = vmatpush2.xpose.msra.mxu0 0.0
    %944 = vmatprep.subr.mxu0 0.0
    %945 = vmatpush2.xpose.msra.mxu0 0.0
    %946 = vmatprep.subr.mxu0 0.0
    %947 = vmatpush2.xpose.msra.mxu0 0.0
    %948 = vmatprep.subr.mxu0 0.0
    %949 = vmatpush2.xpose.msra.mxu0 0.0
    %950 = vmatprep.subr.mxu0 0.0
    %951 = vmatpush2.xpose.msra.mxu0 0.0
    %952 = vmatprep.subr.mxu0 0.0
    %953 = vmatpush2.xpose.msra.mxu0 0.0
    %954 = vmatprep.subr.mxu0 0.0
    %955 = vmatpush2.xpose.msra.mxu0 0.0
    %956 = vmatprep.subr.mxu0 0.0
    %957 = vmatpush2.xpose.msra.mxu0 0.0
    %958 = vmatprep.mubr.f32.mxu0 0.0
    %959 = vmatmul.mubr.f32.gmra.mxu0 %v890
    %v960 = vpop.f32.mrf.mxu0
    %v961 = vadd.f32 0.0, %v960
    %v962 = vpop.f32.mrf.mxu0
    %963 = vdwg.mxu0
    %v964 = vsel %vm211, %v961, -inf
    %965 = vmax.xlane.f32.xlu0 %v964
    %v966 = vpop.xlane.xlu0 %965
    %v967 = vsub.f32 %v961, %v966
    %v968 = vmul.f32 %v967, 1.442695
    %v969 = vpow.pop %v968
    %v970 = vsel %vm211, %v969, 0.0
    %971 = vadd.xlane.f32.xlu0 %v970
    %v972 = vpop.xlane.xlu0 %971
    %v973 = vrcp.pop %v972
    %v974 = vmul.f32 %v969, %v973
    %975 = vrot.lane.b32.xlu0 %v205, 64
    %v976 = vpop.permute.xlu0 %975
    %v979 = vsel %vm211, %v974, 0
    %981 = vmatprep.subr.mxu0 0.0
    %982 = vmatpush1.msra.mxu0 0.0
    %983 = vmatprep.subr.mxu0 0.0
    %984 = vmatpush1.msra.mxu0 0.0
    %985 = vmatprep.subr.mxu0 0.0
    %986 = vmatpush1.msra.mxu0 0.0
    %987 = vmatprep.subr.mxu0 0.0
    %988 = vmatpush1.msra.mxu0 0.0
    %989 = vmatprep.subr.mxu0 0.0
    %990 = vmatpush1.msra.mxu0 0.0
    %991 = vmatprep.subr.mxu0 0.0
    %992 = vmatpush1.msra.mxu0 0.0
    %993 = vmatprep.subr.mxu0 0.0
    %994 = vmatpush1.msra.mxu0 0.0
    %995 = vmatprep.subr.mxu0 0.0
    %996 = vmatpush1.msra.mxu0 0.0
    %997 = vmatprep.subr.mxu0 0.0
    %998 = vmatpush1.msra.mxu0 0.0
    %999 = vmatprep.subr.mxu0 0.0
    %1000 = vmatpush1.msra.mxu0 0.0
    %1001 = vmatprep.subr.mxu0 0.0
    %1002 = vmatpush1.msra.mxu0 0.0
    %1003 = vmatprep.subr.mxu0 0.0
    %1004 = vmatpush1.msra.mxu0 0.0
    %1005 = vmatprep.subr.mxu0 0.0
    %1006 = vmatpush1.msra.mxu0 0.0
    %1007 = vmatprep.subr.mxu0 0.0
    %1008 = vmatpush1.msra.mxu0 0.0
    %1009 = vmatprep.subr.mxu0 0.0
    %1010 = vmatpush1.msra.mxu0 0.0
    %1011 = vmatprep.subr.mxu0 0.0
    %1012 = vmatpush1.msra.mxu0 %v976
    %1013 = vmatprep.subr.mxu0 0.0
    %1014 = vmatpush2.msra.mxu0 0.0
    %1015 = vmatprep.subr.mxu0 0.0
    %1016 = vmatpush2.msra.mxu0 0.0
    %1017 = vmatprep.subr.mxu0 0.0
    %1018 = vmatpush2.msra.mxu0 0.0
    %1019 = vmatprep.subr.mxu0 0.0
    %1020 = vmatpush2.msra.mxu0 0.0
    %1021 = vmatprep.subr.mxu0 0.0
    %1022 = vmatpush2.msra.mxu0 0.0
    %1023 = vmatprep.subr.mxu0 0.0
    %1024 = vmatpush2.msra.mxu0 0.0
    %1025 = vmatprep.subr.mxu0 0.0
    %1026 = vmatpush2.msra.mxu0 0.0
    %1027 = vmatprep.subr.mxu0 0.0
    %1028 = vmatpush2.msra.mxu0 0.0
    %1029 = vmatprep.subr.mxu0 0.0
    %1030 = vmatpush2.msra.mxu0 0.0
    %1031 = vmatprep.subr.mxu0 0.0
    %1032 = vmatpush2.msra.mxu0 0.0
    %1033 = vmatprep.subr.mxu0 0.0
    %1034 = vmatpush2.msra.mxu0 0.0
    %1035 = vmatprep.subr.mxu0 0.0
    %1036 = vmatpush2.msra.mxu0 0.0
    %1037 = vmatprep.subr.mxu0 0.0
    %1038 = vmatpush2.msra.mxu0 0.0
    %1039 = vmatprep.subr.mxu0 0.0
    %1040 = vmatpush2.msra.mxu0 0.0
    %1041 = vmatprep.subr.mxu0 0.0
    %1042 = vmatpush2.msra.mxu0 0.0
    %1043 = vmatprep.subr.mxu0 0.0
    %1044 = vmatpush2.msra.mxu0 0.0
    %1045 = vmatprep.mubr.f32.mxu0 0.0
    %1046 = vmatmul.mubr.f32.gmra.mxu0 %v979
    %v1047 = vpop.f32.mrf.mxu0
    %v1048 = vadd.f32 0.0, %v1047
    %v1049 = vpop.f32.mrf.mxu0
    %1050 = vdwg.mxu0
    %1051 = vst.msk [vmem:[#allocation2 + $0x8] sm:$0xff] %vm211, %v1048
    %1052 = vrot.lane.b32.xlu0 %v205, 120
    %v1053 = vpop.permute.xlu0 %1052
    %1054 = vrot.lane.b32.xlu0 %v205, 88
    %v1055 = vpop.permute.xlu0 %1054
    %v1056 = vsel %vm211, %v1053, 0
    %v1058 = vsel %vm211, %v1055, 0
    %1060 = vmatprep.subr.mxu0 0.0
    %1061 = vmatpush1.xpose.msra.mxu0 0.0
    %1062 = vmatprep.subr.mxu0 0.0
    %1063 = vmatpush1.xpose.msra.mxu0 0.0
    %1064 = vmatprep.subr.mxu0 0.0
    %1065 = vmatpush1.xpose.msra.mxu0 0.0
    %1066 = vmatprep.subr.mxu0 0.0
    %1067 = vmatpush1.xpose.msra.mxu0 0.0
    %1068 = vmatprep.subr.mxu0 0.0
    %1069 = vmatpush1.xpose.msra.mxu0 0.0
    %1070 = vmatprep.subr.mxu0 0.0
    %1071 = vmatpush1.xpose.msra.mxu0 0.0
    %1072 = vmatprep.subr.mxu0 0.0
    %1073 = vmatpush1.xpose.msra.mxu0 0.0
    %1074 = vmatprep.subr.mxu0 0.0
    %1075 = vmatpush1.xpose.msra.mxu0 0.0
    %1076 = vmatprep.subr.mxu0 0.0
    %1077 = vmatpush1.xpose.msra.mxu0 0.0
    %1078 = vmatprep.subr.mxu0 0.0
    %1079 = vmatpush1.xpose.msra.mxu0 0.0
    %1080 = vmatprep.subr.mxu0 0.0
    %1081 = vmatpush1.xpose.msra.mxu0 0.0
    %1082 = vmatprep.subr.mxu0 0.0
    %1083 = vmatpush1.xpose.msra.mxu0 0.0
    %1084 = vmatprep.subr.mxu0 0.0
    %1085 = vmatpush1.xpose.msra.mxu0 0.0
    %1086 = vmatprep.subr.mxu0 0.0
    %1087 = vmatpush1.xpose.msra.mxu0 0.0
    %1088 = vmatprep.subr.mxu0 0.0
    %1089 = vmatpush1.xpose.msra.mxu0 0.0
    %1090 = vmatprep.subr.mxu0 0.0
    %1091 = vmatpush1.xpose.msra.mxu0 %v1058
    %1092 = vmatprep.subr.mxu0 0.0
    %1093 = vmatpush2.xpose.msra.mxu0 0.0
    %1094 = vmatprep.subr.mxu0 0.0
    %1095 = vmatpush2.xpose.msra.mxu0 0.0
    %1096 = vmatprep.subr.mxu0 0.0
    %1097 = vmatpush2.xpose.msra.mxu0 0.0
    %1098 = vmatprep.subr.mxu0 0.0
    %1099 = vmatpush2.xpose.msra.mxu0 0.0
    %1100 = vmatprep.subr.mxu0 0.0
    %1101 = vmatpush2.xpose.msra.mxu0 0.0
    %1102 = vmatprep.subr.mxu0 0.0
    %1103 = vmatpush2.xpose.msra.mxu0 0.0
    %1104 = vmatprep.subr.mxu0 0.0
    %1105 = vmatpush2.xpose.msra.mxu0 0.0
    %1106 = vmatprep.subr.mxu0 0.0
    %1107 = vmatpush2.xpose.msra.mxu0 0.0
    %1108 = vmatprep.subr.mxu0 0.0
    %1109 = vmatpush2.xpose.msra.mxu0 0.0
    %1110 = vmatprep.subr.mxu0 0.0
    %1111 = vmatpush2.xpose.msra.mxu0 0.0
    %1112 = vmatprep.subr.mxu0 0.0
    %1113 = vmatpush2.xpose.msra.mxu0 0.0
    %1114 = vmatprep.subr.mxu0 0.0
    %1115 = vmatpush2.xpose.msra.mxu0 0.0
    %1116 = vmatprep.subr.mxu0 0.0
    %1117 = vmatpush2.xpose.msra.mxu0 0.0
    %1118 = vmatprep.subr.mxu0 0.0
    %1119 = vmatpush2.xpose.msra.mxu0 0.0
    %1120 = vmatprep.subr.mxu0 0.0
    %1121 = vmatpush2.xpose.msra.mxu0 0.0
    %1122 = vmatprep.subr.mxu0 0.0
    %1123 = vmatpush2.xpose.msra.mxu0 0.0
    %1124 = vmatprep.mubr.f32.mxu0 0.0
    %1125 = vmatmul.mubr.f32.gmra.mxu0 %v1056
    %v1126 = vpop.f32.mrf.mxu0
    %v1127 = vadd.f32 0.0, %v1126
    %v1128 = vpop.f32.mrf.mxu0
    %1129 = vdwg.mxu0
    %v1130 = vsel %vm211, %v1127, -inf
    %1131 = vmax.xlane.f32.xlu0 %v1130
    %v1132 = vpop.xlane.xlu0 %1131
    %v1133 = vsub.f32 %v1127, %v1132
    %v1134 = vmul.f32 %v1133, 1.442695
    %v1135 = vpow.pop %v1134
    %v1136 = vsel %vm211, %v1135, 0.0
    %1137 = vadd.xlane.f32.xlu0 %v1136
    %v1138 = vpop.xlane.xlu0 %1137
    %v1139 = vrcp.pop %v1138
    %v1140 = vmul.f32 %v1135, %v1139
    %1141 = vrot.lane.b32.xlu0 %v205, 56
    %v1142 = vpop.permute.xlu0 %1141
    %v1145 = vsel %vm211, %v1140, 0
    %1147 = vmatprep.subr.mxu0 0.0
    %1148 = vmatpush1.msra.mxu0 0.0
    %1149 = vmatprep.subr.mxu0 0.0
    %1150 = vmatpush1.msra.mxu0 0.0
    %1151 = vmatprep.subr.mxu0 0.0
    %1152 = vmatpush1.msra.mxu0 0.0
    %1153 = vmatprep.subr.mxu0 0.0
    %1154 = vmatpush1.msra.mxu0 0.0
    %1155 = vmatprep.subr.mxu0 0.0
    %1156 = vmatpush1.msra.mxu0 0.0
    %1157 = vmatprep.subr.mxu0 0.0
    %1158 = vmatpush1.msra.mxu0 0.0
    %1159 = vmatprep.subr.mxu0 0.0
    %1160 = vmatpush1.msra.mxu0 0.0
    %1161 = vmatprep.subr.mxu0 0.0
    %1162 = vmatpush1.msra.mxu0 0.0
    %1163 = vmatprep.subr.mxu0 0.0
    %1164 = vmatpush1.msra.mxu0 0.0
    %1165 = vmatprep.subr.mxu0 0.0
    %1166 = vmatpush1.msra.mxu0 0.0
    %1167 = vmatprep.subr.mxu0 0.0
    %1168 = vmatpush1.msra.mxu0 0.0
    %1169 = vmatprep.subr.mxu0 0.0
    %1170 = vmatpush1.msra.mxu0 0.0
    %1171 = vmatprep.subr.mxu0 0.0
    %1172 = vmatpush1.msra.mxu0 0.0
    %1173 = vmatprep.subr.mxu0 0.0
    %1174 = vmatpush1.msra.mxu0 0.0
    %1175 = vmatprep.subr.mxu0 0.0
    %1176 = vmatpush1.msra.mxu0 0.0
    %1177 = vmatprep.subr.mxu0 0.0
    %1178 = vmatpush1.msra.mxu0 %v1142
    %1179 = vmatprep.subr.mxu0 0.0
    %1180 = vmatpush2.msra.mxu0 0.0
    %1181 = vmatprep.subr.mxu0 0.0
    %1182 = vmatpush2.msra.mxu0 0.0
    %1183 = vmatprep.subr.mxu0 0.0
    %1184 = vmatpush2.msra.mxu0 0.0
    %1185 = vmatprep.subr.mxu0 0.0
    %1186 = vmatpush2.msra.mxu0 0.0
    %1187 = vmatprep.subr.mxu0 0.0
    %1188 = vmatpush2.msra.mxu0 0.0
    %1189 = vmatprep.subr.mxu0 0.0
    %1190 = vmatpush2.msra.mxu0 0.0
    %1191 = vmatprep.subr.mxu0 0.0
    %1192 = vmatpush2.msra.mxu0 0.0
    %1193 = vmatprep.subr.mxu0 0.0
    %1194 = vmatpush2.msra.mxu0 0.0
    %1195 = vmatprep.subr.mxu0 0.0
    %1196 = vmatpush2.msra.mxu0 0.0
    %1197 = vmatprep.subr.mxu0 0.0
    %1198 = vmatpush2.msra.mxu0 0.0
    %1199 = vmatprep.subr.mxu0 0.0
    %1200 = vmatpush2.msra.mxu0 0.0
    %1201 = vmatprep.subr.mxu0 0.0
    %1202 = vmatpush2.msra.mxu0 0.0
    %1203 = vmatprep.subr.mxu0 0.0
    %1204 = vmatpush2.msra.mxu0 0.0
    %1205 = vmatprep.subr.mxu0 0.0
    %1206 = vmatpush2.msra.mxu0 0.0
    %1207 = vmatprep.subr.mxu0 0.0
    %1208 = vmatpush2.msra.mxu0 0.0
    %1209 = vmatprep.subr.mxu0 0.0
    %1210 = vmatpush2.msra.mxu0 0.0
    %1211 = vmatprep.mubr.f32.mxu0 0.0
    %1212 = vmatmul.mubr.f32.gmra.mxu0 %v1145
    %v1213 = vpop.f32.mrf.mxu0
    %v1214 = vadd.f32 0.0, %v1213
    %v1215 = vpop.f32.mrf.mxu0
    %1216 = vdwg.mxu0
    %1218 = vrot.lane.b32.xlu0 %v1214, 8
    %v1219 = vpop.permute.xlu0 %1218
    %1221 = vst.msk [vmem:[#allocation2 + $0x8] sm:$0xff] %vm543, %v1219
    %1222 = vrot.lane.b32.xlu0 %v205, 112
    %v1223 = vpop.permute.xlu0 %1222
    %1224 = vrot.lane.b32.xlu0 %v205, 80
    %v1225 = vpop.permute.xlu0 %1224
    %v1226 = vsel %vm211, %v1223, 0
    %v1228 = vsel %vm211, %v1225, 0
    %1230 = vmatprep.subr.mxu0 0.0
    %1231 = vmatpush1.xpose.msra.mxu0 0.0
    %1232 = vmatprep.subr.mxu0 0.0
    %1233 = vmatpush1.xpose.msra.mxu0 0.0
    %1234 = vmatprep.subr.mxu0 0.0
    %1235 = vmatpush1.xpose.msra.mxu0 0.0
    %1236 = vmatprep.subr.mxu0 0.0
    %1237 = vmatpush1.xpose.msra.mxu0 0.0
    %1238 = vmatprep.subr.mxu0 0.0
    %1239 = vmatpush1.xpose.msra.mxu0 0.0
    %1240 = vmatprep.subr.mxu0 0.0
    %1241 = vmatpush1.xpose.msra.mxu0 0.0
    %1242 = vmatprep.subr.mxu0 0.0
    %1243 = vmatpush1.xpose.msra.mxu0 0.0
    %1244 = vmatprep.subr.mxu0 0.0
    %1245 = vmatpush1.xpose.msra.mxu0 0.0
    %1246 = vmatprep.subr.mxu0 0.0
    %1247 = vmatpush1.xpose.msra.mxu0 0.0
    %1248 = vmatprep.subr.mxu0 0.0
    %1249 = vmatpush1.xpose.msra.mxu0 0.0
    %1250 = vmatprep.subr.mxu0 0.0
    %1251 = vmatpush1.xpose.msra.mxu0 0.0
    %1252 = vmatprep.subr.mxu0 0.0
    %1253 = vmatpush1.xpose.msra.mxu0 0.0
    %1254 = vmatprep.subr.mxu0 0.0
    %1255 = vmatpush1.xpose.msra.mxu0 0.0
    %1256 = vmatprep.subr.mxu0 0.0
    %1257 = vmatpush1.xpose.msra.mxu0 0.0
    %1258 = vmatprep.subr.mxu0 0.0
    %1259 = vmatpush1.xpose.msra.mxu0 0.0
    %1260 = vmatprep.subr.mxu0 0.0
    %1261 = vmatpush1.xpose.msra.mxu0 %v1228
    %1262 = vmatprep.subr.mxu0 0.0
    %1263 = vmatpush2.xpose.msra.mxu0 0.0
    %1264 = vmatprep.subr.mxu0 0.0
    %1265 = vmatpush2.xpose.msra.mxu0 0.0
    %1266 = vmatprep.subr.mxu0 0.0
    %1267 = vmatpush2.xpose.msra.mxu0 0.0
    %1268 = vmatprep.subr.mxu0 0.0
    %1269 = vmatpush2.xpose.msra.mxu0 0.0
    %1270 = vmatprep.subr.mxu0 0.0
    %1271 = vmatpush2.xpose.msra.mxu0 0.0
    %1272 = vmatprep.subr.mxu0 0.0
    %1273 = vmatpush2.xpose.msra.mxu0 0.0
    %1274 = vmatprep.subr.mxu0 0.0
    %1275 = vmatpush2.xpose.msra.mxu0 0.0
    %1276 = vmatprep.subr.mxu0 0.0
    %1277 = vmatpush2.xpose.msra.mxu0 0.0
    %1278 = vmatprep.subr.mxu0 0.0
    %1279 = vmatpush2.xpose.msra.mxu0 0.0
    %1280 = vmatprep.subr.mxu0 0.0
    %1281 = vmatpush2.xpose.msra.mxu0 0.0
    %1282 = vmatprep.subr.mxu0 0.0
    %1283 = vmatpush2.xpose.msra.mxu0 0.0
    %1284 = vmatprep.subr.mxu0 0.0
    %1285 = vmatpush2.xpose.msra.mxu0 0.0
    %1286 = vmatprep.subr.mxu0 0.0
    %1287 = vmatpush2.xpose.msra.mxu0 0.0
    %1288 = vmatprep.subr.mxu0 0.0
    %1289 = vmatpush2.xpose.msra.mxu0 0.0
    %1290 = vmatprep.subr.mxu0 0.0
    %1291 = vmatpush2.xpose.msra.mxu0 0.0
    %1292 = vmatprep.subr.mxu0 0.0
    %1293 = vmatpush2.xpose.msra.mxu0 0.0
    %1294 = vmatprep.mubr.f32.mxu0 0.0
    %1295 = vmatmul.mubr.f32.gmra.mxu0 %v1226
    %v1296 = vpop.f32.mrf.mxu0
    %v1297 = vadd.f32 0.0, %v1296
    %v1298 = vpop.f32.mrf.mxu0
    %1299 = vdwg.mxu0
    %v1300 = vsel %vm211, %v1297, -inf
    %1301 = vmax.xlane.f32.xlu0 %v1300
    %v1302 = vpop.xlane.xlu0 %1301
    %v1303 = vsub.f32 %v1297, %v1302
    %v1304 = vmul.f32 %v1303, 1.442695
    %v1305 = vpow.pop %v1304
    %v1306 = vsel %vm211, %v1305, 0.0
    %1307 = vadd.xlane.f32.xlu0 %v1306
    %v1308 = vpop.xlane.xlu0 %1307
    %v1309 = vrcp.pop %v1308
    %v1310 = vmul.f32 %v1305, %v1309
    %1311 = vrot.lane.b32.xlu0 %v205, 48
    %v1312 = vpop.permute.xlu0 %1311
    %v1315 = vsel %vm211, %v1310, 0
    %1317 = vmatprep.subr.mxu0 0.0
    %1318 = vmatpush1.msra.mxu0 0.0
    %1319 = vmatprep.subr.mxu0 0.0
    %1320 = vmatpush1.msra.mxu0 0.0
    %1321 = vmatprep.subr.mxu0 0.0
    %1322 = vmatpush1.msra.mxu0 0.0
    %1323 = vmatprep.subr.mxu0 0.0
    %1324 = vmatpush1.msra.mxu0 0.0
    %1325 = vmatprep.subr.mxu0 0.0
    %1326 = vmatpush1.msra.mxu0 0.0
    %1327 = vmatprep.subr.mxu0 0.0
    %1328 = vmatpush1.msra.mxu0 0.0
    %1329 = vmatprep.subr.mxu0 0.0
    %1330 = vmatpush1.msra.mxu0 0.0
    %1331 = vmatprep.subr.mxu0 0.0
    %1332 = vmatpush1.msra.mxu0 0.0
    %1333 = vmatprep.subr.mxu0 0.0
    %1334 = vmatpush1.msra.mxu0 0.0
    %1335 = vmatprep.subr.mxu0 0.0
    %1336 = vmatpush1.msra.mxu0 0.0
    %1337 = vmatprep.subr.mxu0 0.0
    %1338 = vmatpush1.msra.mxu0 0.0
    %1339 = vmatprep.subr.mxu0 0.0
    %1340 = vmatpush1.msra.mxu0 0.0
    %1341 = vmatprep.subr.mxu0 0.0
    %1342 = vmatpush1.msra.mxu0 0.0
    %1343 = vmatprep.subr.mxu0 0.0
    %1344 = vmatpush1.msra.mxu0 0.0
    %1345 = vmatprep.subr.mxu0 0.0
    %1346 = vmatpush1.msra.mxu0 0.0
    %1347 = vmatprep.subr.mxu0 0.0
    %1348 = vmatpush1.msra.mxu0 %v1312
    %1349 = vmatprep.subr.mxu0 0.0
    %1350 = vmatpush2.msra.mxu0 0.0
    %1351 = vmatprep.subr.mxu0 0.0
    %1352 = vmatpush2.msra.mxu0 0.0
    %1353 = vmatprep.subr.mxu0 0.0
    %1354 = vmatpush2.msra.mxu0 0.0
    %1355 = vmatprep.subr.mxu0 0.0
    %1356 = vmatpush2.msra.mxu0 0.0
    %1357 = vmatprep.subr.mxu0 0.0
    %1358 = vmatpush2.msra.mxu0 0.0
    %1359 = vmatprep.subr.mxu0 0.0
    %1360 = vmatpush2.msra.mxu0 0.0
    %1361 = vmatprep.subr.mxu0 0.0
    %1362 = vmatpush2.msra.mxu0 0.0
    %1363 = vmatprep.subr.mxu0 0.0
    %1364 = vmatpush2.msra.mxu0 0.0
    %1365 = vmatprep.subr.mxu0 0.0
    %1366 = vmatpush2.msra.mxu0 0.0
    %1367 = vmatprep.subr.mxu0 0.0
    %1368 = vmatpush2.msra.mxu0 0.0
    %1369 = vmatprep.subr.mxu0 0.0
    %1370 = vmatpush2.msra.mxu0 0.0
    %1371 = vmatprep.subr.mxu0 0.0
    %1372 = vmatpush2.msra.mxu0 0.0
    %1373 = vmatprep.subr.mxu0 0.0
    %1374 = vmatpush2.msra.mxu0 0.0
    %1375 = vmatprep.subr.mxu0 0.0
    %1376 = vmatpush2.msra.mxu0 0.0
    %1377 = vmatprep.subr.mxu0 0.0
    %1378 = vmatpush2.msra.mxu0 0.0
    %1379 = vmatprep.subr.mxu0 0.0
    %1380 = vmatpush2.msra.mxu0 0.0
    %1381 = vmatprep.mubr.f32.mxu0 0.0
    %1382 = vmatmul.mubr.f32.gmra.mxu0 %v1315
    %v1383 = vpop.f32.mrf.mxu0
    %v1384 = vadd.f32 0.0, %v1383
    %v1385 = vpop.f32.mrf.mxu0
    %1386 = vdwg.mxu0
    %1388 = vrot.lane.b32.xlu0 %v1384, 16
    %v1389 = vpop.permute.xlu0 %1388
    %1391 = vst.msk [vmem:[#allocation2 + $0x8] sm:$0xff] %vm714, %v1389
    %1392 = vrot.lane.b32.xlu0 %v205, 104
    %v1393 = vpop.permute.xlu0 %1392
    %1394 = vrot.lane.b32.xlu0 %v205, 72
    %v1395 = vpop.permute.xlu0 %1394
    %v1396 = vsel %vm211, %v1393, 0
    %v1398 = vsel %vm211, %v1395, 0
    %1400 = vmatprep.subr.mxu0 0.0
    %1401 = vmatpush1.xpose.msra.mxu0 0.0
    %1402 = vmatprep.subr.mxu0 0.0
    %1403 = vmatpush1.xpose.msra.mxu0 0.0
    %1404 = vmatprep.subr.mxu0 0.0
    %1405 = vmatpush1.xpose.msra.mxu0 0.0
    %1406 = vmatprep.subr.mxu0 0.0
    %1407 = vmatpush1.xpose.msra.mxu0 0.0
    %1408 = vmatprep.subr.mxu0 0.0
    %1409 = vmatpush1.xpose.msra.mxu0 0.0
    %1410 = vmatprep.subr.mxu0 0.0
    %1411 = vmatpush1.xpose.msra.mxu0 0.0
    %1412 = vmatprep.subr.mxu0 0.0
    %1413 = vmatpush1.xpose.msra.mxu0 0.0
    %1414 = vmatprep.subr.mxu0 0.0
    %1415 = vmatpush1.xpose.msra.mxu0 0.0
    %1416 = vmatprep.subr.mxu0 0.0
    %1417 = vmatpush1.xpose.msra.mxu0 0.0
    %1418 = vmatprep.subr.mxu0 0.0
    %1419 = vmatpush1.xpose.msra.mxu0 0.0
    %1420 = vmatprep.subr.mxu0 0.0
    %1421 = vmatpush1.xpose.msra.mxu0 0.0
    %1422 = vmatprep.subr.mxu0 0.0
    %1423 = vmatpush1.xpose.msra.mxu0 0.0
    %1424 = vmatprep.subr.mxu0 0.0
    %1425 = vmatpush1.xpose.msra.mxu0 0.0
    %1426 = vmatprep.subr.mxu0 0.0
    %1427 = vmatpush1.xpose.msra.mxu0 0.0
    %1428 = vmatprep.subr.mxu0 0.0
    %1429 = vmatpush1.xpose.msra.mxu0 0.0
    %1430 = vmatprep.subr.mxu0 0.0
    %1431 = vmatpush1.xpose.msra.mxu0 %v1398
    %1432 = vmatprep.subr.mxu0 0.0
    %1433 = vmatpush2.xpose.msra.mxu0 0.0
    %1434 = vmatprep.subr.mxu0 0.0
    %1435 = vmatpush2.xpose.msra.mxu0 0.0
    %1436 = vmatprep.subr.mxu0 0.0
    %1437 = vmatpush2.xpose.msra.mxu0 0.0
    %1438 = vmatprep.subr.mxu0 0.0
    %1439 = vmatpush2.xpose.msra.mxu0 0.0
    %1440 = vmatprep.subr.mxu0 0.0
    %1441 = vmatpush2.xpose.msra.mxu0 0.0
    %1442 = vmatprep.subr.mxu0 0.0
    %1443 = vmatpush2.xpose.msra.mxu0 0.0
    %1444 = vmatprep.subr.mxu0 0.0
    %1445 = vmatpush2.xpose.msra.mxu0 0.0
    %1446 = vmatprep.subr.mxu0 0.0
    %1447 = vmatpush2.xpose.msra.mxu0 0.0
    %1448 = vmatprep.subr.mxu0 0.0
    %1449 = vmatpush2.xpose.msra.mxu0 0.0
    %1450 = vmatprep.subr.mxu0 0.0
    %1451 = vmatpush2.xpose.msra.mxu0 0.0
    %1452 = vmatprep.subr.mxu0 0.0
    %1453 = vmatpush2.xpose.msra.mxu0 0.0
    %1454 = vmatprep.subr.mxu0 0.0
    %1455 = vmatpush2.xpose.msra.mxu0 0.0
    %1456 = vmatprep.subr.mxu0 0.0
    %1457 = vmatpush2.xpose.msra.mxu0 0.0
    %1458 = vmatprep.subr.mxu0 0.0
    %1459 = vmatpush2.xpose.msra.mxu0 0.0
    %1460 = vmatprep.subr.mxu0 0.0
    %1461 = vmatpush2.xpose.msra.mxu0 0.0
    %1462 = vmatprep.subr.mxu0 0.0
    %1463 = vmatpush2.xpose.msra.mxu0 0.0
    %1464 = vmatprep.mubr.f32.mxu0 0.0
    %1465 = vmatmul.mubr.f32.gmra.mxu0 %v1396
    %v1466 = vpop.f32.mrf.mxu0
    %v1467 = vadd.f32 0.0, %v1466
    %v1468 = vpop.f32.mrf.mxu0
    %1469 = vdwg.mxu0
    %v1470 = vsel %vm211, %v1467, -inf
    %1471 = vmax.xlane.f32.xlu0 %v1470
    %v1472 = vpop.xlane.xlu0 %1471
    %v1473 = vsub.f32 %v1467, %v1472
    %v1474 = vmul.f32 %v1473, 1.442695
    %v1475 = vpow.pop %v1474
    %v1476 = vsel %vm211, %v1475, 0.0
    %1477 = vadd.xlane.f32.xlu0 %v1476
    %v1478 = vpop.xlane.xlu0 %1477
    %v1479 = vrcp.pop %v1478
    %v1480 = vmul.f32 %v1475, %v1479
    %1481 = vrot.lane.b32.xlu0 %v205, 40
    %v1482 = vpop.permute.xlu0 %1481
    %v1485 = vsel %vm211, %v1480, 0
    %1487 = vmatprep.subr.mxu0 0.0
    %1488 = vmatpush1.msra.mxu0 0.0
    %1489 = vmatprep.subr.mxu0 0.0
    %1490 = vmatpush1.msra.mxu0 0.0
    %1491 = vmatprep.subr.mxu0 0.0
    %1492 = vmatpush1.msra.mxu0 0.0
    %1493 = vmatprep.subr.mxu0 0.0
    %1494 = vmatpush1.msra.mxu0 0.0
    %1495 = vmatprep.subr.mxu0 0.0
    %1496 = vmatpush1.msra.mxu0 0.0
    %1497 = vmatprep.subr.mxu0 0.0
    %1498 = vmatpush1.msra.mxu0 0.0
    %1499 = vmatprep.subr.mxu0 0.0
    %1500 = vmatpush1.msra.mxu0 0.0
    %1501 = vmatprep.subr.mxu0 0.0
    %1502 = vmatpush1.msra.mxu0 0.0
    %1503 = vmatprep.subr.mxu0 0.0
    %1504 = vmatpush1.msra.mxu0 0.0
    %1505 = vmatprep.subr.mxu0 0.0
    %1506 = vmatpush1.msra.mxu0 0.0
    %1507 = vmatprep.subr.mxu0 0.0
    %1508 = vmatpush1.msra.mxu0 0.0
    %1509 = vmatprep.subr.mxu0 0.0
    %1510 = vmatpush1.msra.mxu0 0.0
    %1511 = vmatprep.subr.mxu0 0.0
    %1512 = vmatpush1.msra.mxu0 0.0
    %1513 = vmatprep.subr.mxu0 0.0
    %1514 = vmatpush1.msra.mxu0 0.0
    %1515 = vmatprep.subr.mxu0 0.0
    %1516 = vmatpush1.msra.mxu0 0.0
    %1517 = vmatprep.subr.mxu0 0.0
    %1518 = vmatpush1.msra.mxu0 %v1482
    %1519 = vmatprep.subr.mxu0 0.0
    %1520 = vmatpush2.msra.mxu0 0.0
    %1521 = vmatprep.subr.mxu0 0.0
    %1522 = vmatpush2.msra.mxu0 0.0
    %1523 = vmatprep.subr.mxu0 0.0
    %1524 = vmatpush2.msra.mxu0 0.0
    %1525 = vmatprep.subr.mxu0 0.0
    %1526 = vmatpush2.msra.mxu0 0.0
    %1527 = vmatprep.subr.mxu0 0.0
    %1528 = vmatpush2.msra.mxu0 0.0
    %1529 = vmatprep.subr.mxu0 0.0
    %1530 = vmatpush2.msra.mxu0 0.0
    %1531 = vmatprep.subr.mxu0 0.0
    %1532 = vmatpush2.msra.mxu0 0.0
    %1533 = vmatprep.subr.mxu0 0.0
    %1534 = vmatpush2.msra.mxu0 0.0
    %1535 = vmatprep.subr.mxu0 0.0
    %1536 = vmatpush2.msra.mxu0 0.0
    %1537 = vmatprep.subr.mxu0 0.0
    %1538 = vmatpush2.msra.mxu0 0.0
    %1539 = vmatprep.subr.mxu0 0.0
    %1540 = vmatpush2.msra.mxu0 0.0
    %1541 = vmatprep.subr.mxu0 0.0
    %1542 = vmatpush2.msra.mxu0 0.0
    %1543 = vmatprep.subr.mxu0 0.0
    %1544 = vmatpush2.msra.mxu0 0.0
    %1545 = vmatprep.subr.mxu0 0.0
    %1546 = vmatpush2.msra.mxu0 0.0
    %1547 = vmatprep.subr.mxu0 0.0
    %1548 = vmatpush2.msra.mxu0 0.0
    %1549 = vmatprep.subr.mxu0 0.0
    %1550 = vmatpush2.msra.mxu0 0.0
    %1551 = vmatprep.mubr.f32.mxu0 0.0
    %1552 = vmatmul.mubr.f32.gmra.mxu0 %v1485
    %v1553 = vpop.f32.mrf.mxu0
    %v1554 = vadd.f32 0.0, %v1553
    %v1555 = vpop.f32.mrf.mxu0
    %1556 = vdwg.mxu0
    %1558 = vrot.lane.b32.xlu0 %v1554, 24
    %v1559 = vpop.permute.xlu0 %1558
    %1561 = vst.msk [vmem:[#allocation2 + $0x8] sm:$0xff] %vm885, %v1559
    %v1562 = vld [vmem:[#allocation2] sm:$0xff]
    %v1563 = vld [vmem:[#allocation2 + $0x8] sm:$0xff]
    %v1564 = vlaneseq
    %v1565 = vshrl.u32 %v1564, 7
    %v1566 = vsub.s32 1, %v1565
    %v1567 = vrot.slane %v72, %v1566
    %v1569 = vsel %vm75, %v1562, 0
    %v1572 = vsel %vm75, %v1563, 0
    %1574 = vmatprep.subr.mxu0 0.0
    %1575 = vmatpush1.msra.mxu0 0.0
    %1576 = vmatprep.subr.mxu0 0.0
    %1577 = vmatpush1.msra.mxu0 0.0
    %1578 = vmatprep.subr.mxu0 0.0
    %1579 = vmatpush1.msra.mxu0 0.0
    %1580 = vmatprep.subr.mxu0 0.0
    %1581 = vmatpush1.msra.mxu0 0.0
    %1582 = vmatprep.subr.mxu0 0.0
    %1583 = vmatpush1.msra.mxu0 0.0
    %1584 = vmatprep.subr.mxu0 0.0
    %1585 = vmatpush1.msra.mxu0 0.0
    %1586 = vmatprep.subr.mxu0 0.0
    %1587 = vmatpush1.msra.mxu0 0.0
    %1588 = vmatprep.subr.mxu0 0.0
    %1589 = vmatpush1.msra.mxu0 0.0
    %1590 = vmatprep.subr.mxu0 0.0
    %1591 = vmatpush1.msra.mxu0 0.0
    %1592 = vmatprep.subr.mxu0 0.0
    %1593 = vmatpush1.msra.mxu0 0.0
    %1594 = vmatprep.subr.mxu0 0.0
    %1595 = vmatpush1.msra.mxu0 0.0
    %1596 = vmatprep.subr.mxu0 0.0
    %1597 = vmatpush1.msra.mxu0 0.0
    %1598 = vmatprep.subr.mxu0 0.0
    %1599 = vmatpush1.msra.mxu0 %v63
    %1600 = vmatprep.subr.mxu0 0.0
    %1601 = vmatpush1.msra.mxu0 %v62
    %1602 = vmatprep.subr.mxu0 0.0
    %1603 = vmatpush1.msra.mxu0 %v61
    %1604 = vmatprep.subr.mxu0 0.0
    %1605 = vmatpush1.msra.mxu0 %v60
    %1606 = vmatprep.subr.mxu0 0.0
    %1607 = vmatpush2.msra.mxu0 0.0
    %1608 = vmatprep.subr.mxu0 0.0
    %1609 = vmatpush2.msra.mxu0 0.0
    %1610 = vmatprep.subr.mxu0 0.0
    %1611 = vmatpush2.msra.mxu0 0.0
    %1612 = vmatprep.subr.mxu0 0.0
    %1613 = vmatpush2.msra.mxu0 0.0
    %1614 = vmatprep.subr.mxu0 0.0
    %1615 = vmatpush2.msra.mxu0 0.0
    %1616 = vmatprep.subr.mxu0 0.0
    %1617 = vmatpush2.msra.mxu0 0.0
    %1618 = vmatprep.subr.mxu0 0.0
    %1619 = vmatpush2.msra.mxu0 0.0
    %1620 = vmatprep.subr.mxu0 0.0
    %1621 = vmatpush2.msra.mxu0 0.0
    %1622 = vmatprep.subr.mxu0 0.0
    %1623 = vmatpush2.msra.mxu0 0.0
    %1624 = vmatprep.subr.mxu0 0.0
    %1625 = vmatpush2.msra.mxu0 0.0
    %1626 = vmatprep.subr.mxu0 0.0
    %1627 = vmatpush2.msra.mxu0 0.0
    %1628 = vmatprep.subr.mxu0 0.0
    %1629 = vmatpush2.msra.mxu0 0.0
    %1630 = vmatprep.subr.mxu0 0.0
    %1631 = vmatpush2.msra.mxu0 0.0
    %1632 = vmatprep.subr.mxu0 0.0
    %1633 = vmatpush2.msra.mxu0 0.0
    %1634 = vmatprep.subr.mxu0 0.0
    %1635 = vmatpush2.msra.mxu0 0.0
    %1636 = vmatprep.subr.mxu0 0.0
    %1637 = vmatpush2.msra.mxu0 0.0
    %1638 = vmatprep.mubr.f32.mxu0 0.0
    %1639 = vmatmul.mubr.f32.gmra.mxu0 %v1569
    %v1640 = vpop.f32.mrf.mxu0
    %v1641 = vadd.f32 %v1567, %v1640
    %v1642 = vpop.f32.mrf.mxu0
    %1643 = vmatprep.mubr.f32.mxu0 0.0
    %1644 = vmatmul.mubr.f32.gmra.mxu0 %v1572
    %v1645 = vpop.f32.mrf.mxu0
    %v1646 = vadd.f32 %v1567, %v1645
    %v1647 = vpop.f32.mrf.mxu0
    %1648 = vdwg.mxu0
    %v1649 = vadd.f32 %v54, %v1641
    %v1650 = vadd.f32 %v55, %v1646
    %s1651 = sld [smem:[#allocation3 + $0x2]]
    %s1652 = sld [smem:[#allocation3 + $0x3]]
    %v1653 = vsel %vm75, %v1649, 0.0
    %1654 = vadd.xlane.f32.xlu0 %v1653
    %v1655 = vpop.xlane.xlu0 %1654
    %v1656 = vsel %vm75, %v1650, 0.0
    %1657 = vadd.xlane.f32.xlu0 %v1656
    %v1658 = vpop.xlane.xlu0 %1657
    %v1659 = vmul.f32 %v1655, %v82
    %v1660 = vmul.f32 %v1658, %v82
    %v1661 = vsub.f32 %v1649, %v1659
    %v1662 = vsub.f32 %v1650, %v1660
    %v1663 = vmul.f32 %v1661, %v1661
    %v1664 = vmul.f32 %v1662, %v1662
    %v1665 = vsel %vm75, %v1663, 0.0
    %1666 = vadd.xlane.f32.xlu0 %v1665
    %v1667 = vpop.xlane.xlu0 %1666
    %v1668 = vsel %vm75, %v1664, 0.0
    %1669 = vadd.xlane.f32.xlu0 %v1668
    %v1670 = vpop.xlane.xlu0 %1669
    %v1671 = vmul.f32 %v1667, 0.032258064
    %v1672 = vmul.f32 %v1670, 0.032258064
    %v1673 = vstv %s1651
    %v1674 = vmul.f32 %v1673, %v1661
    %v1675 = vmul.f32 %v1673, %v1662
    %v1676 = vrsqrt.pop %v1671
    %v1677 = vmul.f32 %v1671, %v1676
    %vm1678 = vcmp.eq.f32.partialorder %v1671, inf
    %v1679 = vsel %vm1678, %v1671, %v1677
    %vm1680 = vcmp.eq.f32.partialorder %v1671, 0.0
    %v1681 = vand.u32 %v1671, 2147483648
    %v1682 = vsel %vm1680, %v1681, %v1679
    %v1683 = vrsqrt.pop %v1672
    %v1684 = vmul.f32 %v1672, %v1683
    %vm1685 = vcmp.eq.f32.partialorder %v1672, inf
    %v1686 = vsel %vm1685, %v1672, %v1684
    %vm1687 = vcmp.eq.f32.partialorder %v1672, 0.0
    %v1688 = vand.u32 %v1672, 2147483648
    %v1689 = vsel %vm1687, %v1688, %v1686
    %v1690 = vadd.f32 %v1682, 1e-06
    %v1691 = vadd.f32 %v1689, 1e-06
    %v1692 = vrcp.pop %v1690
    %v1693 = vmul.f32 %v1674, %v1692
    %v1694 = vrcp.pop %v1691
    %v1695 = vmul.f32 %v1675, %v1694
    %v1696 = vstv %s1652
    %v1697 = vadd.f32 %v1693, %v1696
    %v1698 = vadd.f32 %v1695, %v1696
    %v1699 = vlaneseq
    %v1700 = vshrl.u32 %v1699, 7
    %v1701 = vsub.s32 2, %v1700
    %v1702 = vrot.slane %v72, %v1701
    %v1704 = vsel %vm75, %v1697, 0
    %v1707 = vsel %vm75, %v1698, 0
    %1709 = vmatprep.subr.mxu0 0.0
    %1710 = vmatpush1.msra.mxu0 0.0
    %1711 = vmatprep.subr.mxu0 0.0
    %1712 = vmatpush1.msra.mxu0 0.0
    %1713 = vmatprep.subr.mxu0 0.0
    %1714 = vmatpush1.msra.mxu0 0.0
    %1715 = vmatprep.subr.mxu0 0.0
    %1716 = vmatpush1.msra.mxu0 0.0
    %1717 = vmatprep.subr.mxu0 0.0
    %1718 = vmatpush1.msra.mxu0 0.0
    %1719 = vmatprep.subr.mxu0 0.0
    %1720 = vmatpush1.msra.mxu0 0.0
    %1721 = vmatprep.subr.mxu0 0.0
    %1722 = vmatpush1.msra.mxu0 0.0
    %1723 = vmatprep.subr.mxu0 0.0
    %1724 = vmatpush1.msra.mxu0 0.0
    %1725 = vmatprep.subr.mxu0 0.0
    %1726 = vmatpush1.msra.mxu0 0.0
    %1727 = vmatprep.subr.mxu0 0.0
    %1728 = vmatpush1.msra.mxu0 0.0
    %1729 = vmatprep.subr.mxu0 0.0
    %1730 = vmatpush1.msra.mxu0 0.0
    %1731 = vmatprep.subr.mxu0 0.0
    %1732 = vmatpush1.msra.mxu0 0.0
    %1733 = vmatprep.subr.mxu0 0.0
    %1734 = vmatpush1.msra.mxu0 %v67
    %1735 = vmatprep.subr.mxu0 0.0
    %1736 = vmatpush1.msra.mxu0 %v66
    %1737 = vmatprep.subr.mxu0 0.0
    %1738 = vmatpush1.msra.mxu0 %v65
    %1739 = vmatprep.subr.mxu0 0.0
    %1740 = vmatpush1.msra.mxu0 %v64
    %1741 = vmatprep.subr.mxu0 0.0
    %1742 = vmatpush2.msra.mxu0 0.0
    %1743 = vmatprep.subr.mxu0 0.0
    %1744 = vmatpush2.msra.mxu0 0.0
    %1745 = vmatprep.subr.mxu0 0.0
    %1746 = vmatpush2.msra.mxu0 0.0
    %1747 = vmatprep.subr.mxu0 0.0
    %1748 = vmatpush2.msra.mxu0 0.0
    %1749 = vmatprep.subr.mxu0 0.0
    %1750 = vmatpush2.msra.mxu0 0.0
    %1751 = vmatprep.subr.mxu0 0.0
    %1752 = vmatpush2.msra.mxu0 0.0
    %1753 = vmatprep.subr.mxu0 0.0
    %1754 = vmatpush2.msra.mxu0 0.0
    %1755 = vmatprep.subr.mxu0 0.0
    %1756 = vmatpush2.msra.mxu0 0.0
    %1757 = vmatprep.subr.mxu0 0.0
    %1758 = vmatpush2.msra.mxu0 0.0
    %1759 = vmatprep.subr.mxu0 0.0
    %1760 = vmatpush2.msra.mxu0 0.0
    %1761 = vmatprep.subr.mxu0 0.0
    %1762 = vmatpush2.msra.mxu0 0.0
    %1763 = vmatprep.subr.mxu0 0.0
    %1764 = vmatpush2.msra.mxu0 0.0
    %1765 = vmatprep.subr.mxu0 0.0
    %1766 = vmatpush2.msra.mxu0 0.0
    %1767 = vmatprep.subr.mxu0 0.0
    %1768 = vmatpush2.msra.mxu0 0.0
    %1769 = vmatprep.subr.mxu0 0.0
    %1770 = vmatpush2.msra.mxu0 0.0
    %1771 = vmatprep.subr.mxu0 0.0
    %1772 = vmatpush2.msra.mxu0 0.0
    %1773 = vmatprep.mubr.f32.mxu0 0.0
    %1774 = vmatmul.mubr.f32.gmra.mxu0 %v1704
    %v1775 = vpop.f32.mrf.mxu0
    %v1776 = vadd.f32 %v1702, %v1775
    %v1777 = vpop.f32.mrf.mxu0
    %1778 = vmatprep.mubr.f32.mxu0 0.0
    %1779 = vmatmul.mubr.f32.gmra.mxu0 %v1707
    %v1780 = vpop.f32.mrf.mxu0
    %v1781 = vadd.f32 %v1702, %v1780
    %v1782 = vpop.f32.mrf.mxu0
    %1783 = vdwg.mxu0
    %v1784 = vmax.f32 %v1776, 0.0
    %v1785 = vmax.f32 %v1781, 0.0
    %v1786 = vlaneseq
    %v1787 = vshrl.u32 %v1786, 7
    %v1788 = vsub.s32 3, %v1787
    %v1789 = vrot.slane %v72, %v1788
    %1790 = vmatprep.subr.mxu0 0.0
    %1791 = vmatpush1.xpose.msra.mxu0 0.0
    %1792 = vmatprep.subr.mxu0 0.0
    %1793 = vmatpush1.xpose.msra.mxu0 0.0
    %1794 = vmatprep.subr.mxu0 0.0
    %1795 = vmatpush1.xpose.msra.mxu0 0.0
    %1796 = vmatprep.subr.mxu0 0.0
    %1797 = vmatpush1.xpose.msra.mxu0 0.0
    %1798 = vmatprep.subr.mxu0 0.0
    %1799 = vmatpush1.xpose.msra.mxu0 0.0
    %1800 = vmatprep.subr.mxu0 0.0
    %1801 = vmatpush1.xpose.msra.mxu0 0.0
    %1802 = vmatprep.subr.mxu0 0.0
    %1803 = vmatpush1.xpose.msra.mxu0 0.0
    %1804 = vmatprep.subr.mxu0 0.0
    %1805 = vmatpush1.xpose.msra.mxu0 0.0
    %1806 = vmatprep.subr.mxu0 0.0
    %1807 = vmatpush1.xpose.msra.mxu0 0.0
    %1808 = vmatprep.subr.mxu0 0.0
    %1809 = vmatpush1.xpose.msra.mxu0 0.0
    %1810 = vmatprep.subr.mxu0 0.0
    %1811 = vmatpush1.xpose.msra.mxu0 0.0
    %1812 = vmatprep.subr.mxu0 0.0
    %1813 = vmatpush1.xpose.msra.mxu0 0.0
    %1814 = vmatprep.subr.mxu0 0.0
    %1815 = vmatpush1.xpose.msra.mxu0 %v71
    %1816 = vmatprep.subr.mxu0 0.0
    %1817 = vmatpush1.xpose.msra.mxu0 %v70
    %1818 = vmatprep.subr.mxu0 0.0
    %1819 = vmatpush1.xpose.msra.mxu0 %v69
    %1820 = vmatprep.subr.mxu0 0.0
    %1821 = vmatpush1.xpose.msra.mxu0 %v68
    %1822 = vmatprep.subr.mxu0 0.0
    %1823 = vmatpush2.xpose.msra.mxu0 0.0
    %1824 = vmatprep.subr.mxu0 0.0
    %1825 = vmatpush2.xpose.msra.mxu0 0.0
    %1826 = vmatprep.subr.mxu0 0.0
    %1827 = vmatpush2.xpose.msra.mxu0 0.0
    %1828 = vmatprep.subr.mxu0 0.0
    %1829 = vmatpush2.xpose.msra.mxu0 0.0
    %1830 = vmatprep.subr.mxu0 0.0
    %1831 = vmatpush2.xpose.msra.mxu0 0.0
    %1832 = vmatprep.subr.mxu0 0.0
    %1833 = vmatpush2.xpose.msra.mxu0 0.0
    %1834 = vmatprep.subr.mxu0 0.0
    %1835 = vmatpush2.xpose.msra.mxu0 0.0
    %1836 = vmatprep.subr.mxu0 0.0
    %1837 = vmatpush2.xpose.msra.mxu0 0.0
    %1838 = vmatprep.subr.mxu0 0.0
    %1839 = vmatpush2.xpose.msra.mxu0 0.0
    %1840 = vmatprep.subr.mxu0 0.0
    %1841 = vmatpush2.xpose.msra.mxu0 0.0
    %1842 = vmatprep.subr.mxu0 0.0
    %1843 = vmatpush2.xpose.msra.mxu0 0.0
    %1844 = vmatprep.subr.mxu0 0.0
    %1845 = vmatpush2.xpose.msra.mxu0 0.0
    %1846 = vmatprep.subr.mxu0 0.0
    %1847 = vmatpush2.xpose.msra.mxu0 0.0
    %1848 = vmatprep.subr.mxu0 0.0
    %1849 = vmatpush2.xpose.msra.mxu0 0.0
    %1850 = vmatprep.subr.mxu0 0.0
    %1851 = vmatpush2.xpose.msra.mxu0 0.0
    %1852 = vmatprep.subr.mxu0 0.0
    %1853 = vmatpush2.xpose.msra.mxu0 0.0
    %1854 = vmatprep.mubr.f32.mxu0 0.0
    %1855 = vmatmul.mubr.f32.gmra.mxu0 %v1784
    %v1856 = vpop.f32.mrf.mxu0
    %v1857 = vadd.f32 %v1789, %v1856
    %v1858 = vpop.f32.mrf.mxu0
    %1859 = vmatprep.mubr.f32.mxu0 0.0
    %1860 = vmatmul.mubr.f32.gmra.mxu0 %v1785
    %v1861 = vpop.f32.mrf.mxu0
    %v1862 = vadd.f32 %v1789, %v1861
    %v1863 = vpop.f32.mrf.mxu0
    %1864 = vdwg.mxu0
    %v1865 = vadd.f32 %v1649, %v1857
    %v1866 = vadd.f32 %v1650, %v1862
    %1867 = vst.msk [vmem:[#allocation10] sm:$0xff] %vm75, %v1865
    %1868 = vst.msk [vmem:[#allocation10 + $0x8] sm:$0xff] %vm75, %v1866
    // Predicated region
    $region26: #{tpu_custom_call.1} parent=1 // pred_check
      _
    $region27: #{tpu_custom_call.1} parent=1 // pred_check_branch
      %1870 = sbr.rel (0) target = $region29
    $region28: #{tpu_custom_call.1} parent=1 // pred_region
      %s1872 = ssub.s32 256, 256
      %1873 = vsyncadd [#allocation5], %s1872
      %s1874 = sshll.u32 [#allocation10], 4
      %s1875 = int_to_ptr.vmem [resolvable:$true] %s1874
      %1880 = dma.vmem_to_hbm [thread:$0]  %s1875, 256, %s3, [#allocation5], 128, 128, 8
    $region29: #{tpu_custom_call.1} parent=1 // pred_fallthru
      _
    // Predicated region
    $region30: #{tpu_custom_call.1} parent=1 // pred_check
      _
    $region31: #{tpu_custom_call.1} parent=1 // pred_check_branch
      %1882 = sbr.rel (0) target = $region33
    $region32: #{tpu_custom_call.1} parent=1 // pred_region
      %1883 = dma.done [#allocation5], 256
    $region33: #{tpu_custom_call.1} parent=1 // pred_fallthru
      _
    %1884 = vsyncpa [#allocation4], 1
    %1885 = vsyncpa [#allocation9], 1
    %1886 = vsyncpa [#allocation5], 1
    %1887 = vsyncpa [#allocation6], 1

</llo_original>
